<compile_context>
chip_gen: v6e
topology: v6e:2x2x1
jax: 0.10.0
libtpu: 0.0.40
codegen_flags: <defaults>
</compile_context>

<pallas_src>
import functools

import jax
import jax.numpy as jnp
from jax.experimental import pallas as pl
from jax.experimental.pallas import tpu as pltpu

# MXU-operand / activation dtype.  Intentional divergence from the f32 PyTorch
# module (2x MXU throughput, half the HBM bytes); set to jnp.float32 for exact
# parity with the original UNetDecoder numerics.
COMPUTE_DTYPE = jnp.bfloat16


# ----------------------------- Pallas kernel --------------------------------
#
# Each "slab" is one (image, row-tile) window of the zero-padded activation:
# th+2 padded rows of width wp = W+2, flattened to (th+2)*wp rows of Cin
# channels and zero-padded up to r rows (r % 8 == 0).  For output position
# q = rr*wp + c inside a slab, conv tap (kh, kw) reads slab row q + kh*wp + kw,
# so every tap is a static contiguous row window and the whole conv is a few
# accumulated 2-D matmuls executed entirely in VMEM -- no HBM im2col.  The
# epilogue stores only the W valid columns of each output row (wrap columns
# and halo rows are never written to HBM).

def _conv3x3_bias_relu_kernel(x_ref, w_ref, b_ref, o_ref, *,
                              g, th, w_out, wp, r, pack_k):
    # x_ref: (g*r, Cin)        bf16  -- g halo slabs, spatially flattened
    # w_ref: (3, 3*Cin, Cout)  bf16  -- kh-major weights, K packed as kw*Cin+ci
    # b_ref: (1, Cout)         f32
    # o_ref: (g, th*W, Cout)   bf16  -- valid output rows only
    cin = x_ref.shape[-1]
    cout = o_ref.shape[-1]
    # One matmul M covering every needed output row (halo / wrap rows in the
    # gaps are computed but skipped by the store loop); all taps stay inside
    # the g*r block by construction (each slab carries its own halo).
    m = (g - 1) * r + (th - 1) * wp + w_out

    x = x_ref[...]                        # single VMEM load of the block
    acc = jnp.zeros((m, cout), jnp.float32)
    if pack_k:
        # Lane-pack the 3 kw taps into K = 3*Cin: 3 MXU matmuls per step.
        for kh in range(3):
            base = kh * wp
            xk = jnp.concatenate(
                [x[base + kw: base + kw + m, :] for kw in range(3)], axis=-1)
            acc = acc + jnp.dot(xk, w_ref[kh],
                                preferred_element_type=jnp.float32)
    else:
        # Unpacked path (Cin already >= 128): 9 matmuls with K = Cin.
        for kh in range(3):
            for kw in range(3):
                off = kh * wp + kw
                acc = acc + jnp.dot(x[off: off + m, :],
                                    w_ref[kh, kw * cin:(kw + 1) * cin, :],
                                    preferred_element_type=jnp.float32)

    y = jnp.maximum(acc + b_ref[...], 0.0).astype(o_ref.dtype)

    # Fused "drop the wrap columns" epilogue: store only the valid W-row
    # windows of each output row (no wrapper-side slice pass).
    # TODO(synk): for up-sampling blocks also store each window to its 2x/4x
    # duplicated destination rows to fuse the nearest-2x upsample.
    # TODO(synk): pack W*Cout onto the lane axis for lane-dense stores when
    # Cout < 128 (needs an in-kernel sublane->lane relayout of each chunk).
    for gg in range(g):
        for rr in range(th):
            src = gg * r + rr * wp
            o_ref[gg, rr * w_out:(rr + 1) * w_out, :] = y[src: src + w_out, :]


# --------------------------- tiling / VMEM budget ----------------------------

def _round_up(a, b):
    return (a + b - 1) // b * b


def _vmem_budget():
    """(tiling budget, vmem_limit_bytes) derived from the chip's VMEM size."""
    cap = 64 * 1024 * 1024                         # conservative default (v7x)
    try:
        info = pltpu.get_tpu_info()
        for name in ("vmem_capacity_bytes", "vmem_bytes", "vmem_size_bytes"):
            v = getattr(info, name, None)
            if v:
                cap = int(v)
                break
    except Exception:
        pass
    # v7x (64 MiB physical) -> ~48 MiB limit; v5e/v6e (128 MiB) -> ~96 MiB.
    vmem_limit = max(min(cap * 3 // 4, 100 * 1024 * 1024), 32 * 1024 * 1024)
    return int(vmem_limit * 0.8), int(vmem_limit)


def _choose_tiling(n, h, w, cin, cout, budget):
    """Pick (row-tile th, slabs-per-grid-step g) so one step fits the budget."""
    wp = w + 2
    kp = 3 * cin if cin < 128 else cin            # packed-K operand width

    def est(th, g):
        r = _round_up((th + 2) * wp, 8)
        m = (g - 1) * r + (th - 1) * wp + w
        in_blk = g * r * cin * 2                  # bf16 input block
        out_blk = g * th * w * cout * 2           # bf16 output block
        wgt = 9 * cin * cout * 2
        live = g * r * cin * 2 + m * (kp * 2 + cout * 4 + cout * 2)
        return 2 * in_blk + 2 * out_blk + 2 * wgt + live   # 2x = double buffers

    # Largest row tile (divisor of H) that fits with no grouping.
    th = 1
    for d in sorted((d for d in range(1, h + 1) if h % d == 0), reverse=True):
        if est(d, 1) <= budget:
            th = d
            break
    s = n * (h // th)

    # Group slabs per step to amortize the ~0.35us grid-step overhead and fill
    # the MXU for small layers, keeping >= 2 steps (megacore + pipelining)
    # whenever more than one slab exists.
    g = 1
    min_steps = 2 if s >= 2 else 1
    for d in sorted((d for d in range(1, s + 1) if s % d == 0), reverse=True):
        if s // d < min_steps or d * th > 512:    # cap unrolled-store count
            continue
        if est(th, d) <= budget:
            g = d
            break
    return th, g


# ------------------------------ conv wrapper ---------------------------------

@functools.partial(jax.jit,
                   static_argnames=("th", "g", "r", "pack_k", "vmem_limit"))
def _conv_impl(x, w, b, *, th, g, r, pack_k, vmem_limit):
    n, h, wd, cin = x.shape
    cout = w.shape[-1]
    wp = wd + 2
    nt = h // th
    s = n * nt

    # Halo row-tiles ("slabs"): a single fused pad + gather + cast pass.
    # TODO(synk): read the unpadded activation with manual make_async_copy
    # (memory_space=pl.ANY) and zero-fill the halos in VMEM to drop this pass.
    xp = jnp.pad(x.astype(COMPUTE_DTYPE), ((0, 0), (1, 1), (1, 1), (0, 0)))
    rows = jnp.arange(nt)[:, None] * th + jnp.arange(th + 2)[None, :]
    slabs = xp[:, rows].reshape(n, nt, (th + 2) * wp, cin)
    if r > (th + 2) * wp:                          # pad slab rows to r (r%8==0)
        slabs = jnp.pad(slabs, ((0, 0), (0, 0), (0, r - (th + 2) * wp), (0, 0)))
    x2 = slabs.reshape(s * r, cin)

    w9 = w.reshape(3, 3 * cin, cout).astype(COMPUTE_DTYPE)   # kh-major, packed K
    b2 = b.reshape(1, cout).astype(jnp.float32)

    kernel = functools.partial(_conv3x3_bias_relu_kernel,
                               g=g, th=th, w_out=wd, wp=wp, r=r, pack_k=pack_k)

    # TODO(synk): K-tile the weights for Cin >= 512 (v7x) and single-buffer the
    # grid-invariant weight/bias blocks (pipeline_mode=pl.Buffered(1)) once
    # validated on all generations; also column-tile very wide images.
    out = pl.pallas_call(
        kernel,
        out_shape=jax.ShapeDtypeStruct((s, th * wd, cout), COMPUTE_DTYPE),
        grid=(s // g,),
        in_specs=[
            pl.BlockSpec((g * r, cin), lambda i: (i, 0)),
            pl.BlockSpec((3, 3 * cin, cout), lambda i: (0, 0, 0)),  # invariant
            pl.BlockSpec((1, cout), lambda i: (0, 0)),              # invariant
        ],
        out_specs=pl.BlockSpec((g, th * wd, cout), lambda i: (i, 0, 0)),
        compiler_params=pltpu.CompilerParams(
            dimension_semantics=("parallel",),
            vmem_limit_bytes=vmem_limit),
    )(x2, w9, b2)

    # (s, th*wd, cout) is exactly (n, nt, th, wd, cout) row-major: free
    # reshape, no slicing pass.
    return out.reshape(n, h, wd, cout)


def conv3x3_relu(x, w, b):
    """3x3 SAME conv + bias + ReLU (NHWC) via the Pallas kernel.

    x: (N, H, W, Cin), w: (3, 3, Cin, Cout) HWIO, b: (Cout,).
    Returns (N, H, W, Cout) in COMPUTE_DTYPE.
    """
    n, h, wd, cin = x.shape
    budget, vmem_limit = _vmem_budget()
    th, g = _choose_tiling(n, h, wd, cin, w.shape[-1], budget)
    r = _round_up((th + 2) * (wd + 2), 8)
    try:
        return _conv_impl(x, w, b, th=th, g=g, r=r,
                          pack_k=(cin < 128), vmem_limit=vmem_limit)
    except Exception:
        # Conservative fallback: 9 unpacked K=Cin matmuls (no lane concat).
        return _conv_impl(x, w, b, th=th, g=g, r=r,
                          pack_k=False, vmem_limit=vmem_limit)


def conv3x3_relu_ref(x, w, b):
    """Pure-JAX reference with the same bf16-operand / f32-accum numerics."""
    y = jax.lax.conv_general_dilated(
        x.astype(COMPUTE_DTYPE), w.astype(COMPUTE_DTYPE),
        window_strides=(1, 1), padding="SAME",
        dimension_numbers=("NHWC", "HWIO", "NHWC"),
        preferred_element_type=jnp.float32)
    return jnp.maximum(y + b.astype(jnp.float32), 0.0).astype(COMPUTE_DTYPE)


# --------------------------- decoder glue (JAX) ------------------------------

def upsample2x(x):
    # nearest-neighbor 2x upsample (NHWC), bf16 activations.
    # TODO(synk): fuse into the conv kernel's store epilogue to remove this
    # extra read-1x / write-4x HBM pass.
    return jnp.repeat(jnp.repeat(x, 2, axis=1), 2, axis=2)


def center_crop(skip, x):
    """Crop whichever of skip / x is larger, symmetrically (NHWC)."""
    h1, w1 = skip.shape[1:3]
    h2, w2 = x.shape[1:3]
    ht, wt = min(h1, h2), min(w1, w2)
    dh1, dw1 = (h1 - ht) // 2, (w1 - wt) // 2
    dh2, dw2 = (h2 - ht) // 2, (w2 - wt) // 2
    return (skip[:, dh1:dh1 + ht, dw1:dw1 + wt, :],
            x[:, dh2:dh2 + ht, dw2:dw2 + wt, :])


# ------------------------------ UNetDecoder ---------------------------------
# Each block = Conv3x3(pad=1) + ReLU (+ nearest 2x upsample, except the last
# block).  All blocks but the first are preceded by torch.cat([skip, x], dim=1)
# of a center-cropped skip, matching the PyTorch module.

def unet_decoder_forward(x_nchw, skips_nchw, block_params, conv_fn,
                         reverse_skips=True):
    assert len(block_params) > 1
    assert len(skips_nchw) == len(block_params) - 1

    def block(x, params):
        w, b, up = params
        x = conv_fn(x, w, b)
        return upsample2x(x) if up else x

    # NCHW -> NHWC, bf16 activations end-to-end.
    x = jnp.transpose(x_nchw, (0, 2, 3, 1)).astype(COMPUTE_DTYPE)
    skips = [jnp.transpose(s, (0, 2, 3, 1)).astype(COMPUTE_DTYPE)
             for s in skips_nchw]
    if reverse_skips:
        skips = skips[::-1]

    x = block(x, block_params[0])
    for i in range(1, len(block_params)):
        skip, x = center_crop(skips[i - 1], x)
        x = jnp.concatenate([skip, x], axis=-1)   # torch.cat(dim=1) == last axis
        x = block(x, block_params[i])
    return jnp.transpose(x, (0, 3, 1, 2)).astype(jnp.float32)   # NHWC -> NCHW


# --------------------------------- main --------------------------------------

if __name__ == "__main__":
    key = jax.random.PRNGKey(0)
    ks = jax.random.split(key, 16)

    # Small shapes consistent with the decoder's forward:
    #   x:     (N=2, C=8,  4,  4)   bottleneck feature
    #   skip0: (N=2, C=4, 16, 16)   shallow skip (used last)
    #   skip1: (N=2, C=8, 10, 10)   deep skip (used first; exercises center-crop)
    x = jax.random.normal(ks[0], (2, 8, 4, 4), jnp.float32)
    skip0 = jax.random.normal(ks[1], (2, 4, 16, 16), jnp.float32)
    skip1 = jax.random.normal(ks[2], (2, 8, 10, 10), jnp.float32)
    skips = [skip0, skip1]   # encoder order; forward reverses them

    def conv_params(k, cin, cout):
        kw_, kb_ = jax.random.split(k)
        w = jax.random.normal(kw_, (3, 3, cin, cout), jnp.float32) * 0.1
        b = jax.random.normal(kb_, (cout,), jnp.float32) * 0.1
        return w, b

    # block0: conv(8 -> 16), up      -> (2,16, 8, 8)
    # block1: conv(16+8 -> 16), up   -> (2,16,16,16)
    # block2: conv(16+4 -> 8), no up -> (2, 8,16,16)
    w0, b0 = conv_params(ks[3], 8, 16)
    w1, b1 = conv_params(ks[4], 16 + 8, 16)
    w2, b2 = conv_params(ks[5], 16 + 4, 8)
    block_params = [(w0, b0, True), (w1, b1, True), (w2, b2, False)]

    out = unet_decoder_forward(x, skips, block_params, conv3x3_relu)
    out = jax.block_until_ready(out)
    assert out.shape == (2, 8, 16, 16), out.shape

    # Correctness check against a pure-JAX (lax.conv) reference of the same
    # graph with identical bf16-operand / f32-accumulate numerics.
    ref = jax.block_until_ready(
        unet_decoder_forward(x, skips, block_params, conv3x3_relu_ref))
    max_err = float(jnp.max(jnp.abs(out - ref)))
    assert jnp.allclose(out, ref, atol=3e-2, rtol=3e-2), max_err

    print("KERNEL_OK")
</pallas_src>

<mosaic_0001>
module attributes {stable_mosaic.version = 11 : i64} {
  func.func @_conv3x3_bias_relu_kernel(%arg0: i32, %arg1: memref<40x8xbf16, #tpu.memory_space<vmem>>, %arg2: memref<3x24x16xbf16, #tpu.memory_space<vmem>>, %arg3: memref<1x16xf32, #tpu.memory_space<vmem>>, %arg4: memref<1x16x16xbf16, #tpu.memory_space<vmem>>) attributes {dimension_semantics = [#tpu.dimension_semantics<parallel>], iteration_bounds = array<i64: 2>, scalar_prefetch = 0 : i64, scratch_operands = 0 : i64, tpu.core_type = #tpu.core_type<tc>, window_params = [{transform_indices = @transform_0, window_bounds = array<i64: 40, 8>}, {pipeline_mode = #tpu.pipeline_mode<synchronous>, transform_indices = @transform_1, window_bounds = array<i64: 3, 24, 16>}, {pipeline_mode = #tpu.pipeline_mode<synchronous>, transform_indices = @transform_2, window_bounds = array<i64: 1, 16>}, {transform_indices = @transform_3, window_bounds = array<i64: 1, 16, 16>}]} {
    %c0 = arith.constant 0 : index
    %c0_0 = arith.constant 0 : index
    %0 = vector.load %arg1[%c0, %c0_0] : memref<40x8xbf16, #tpu.memory_space<vmem>>, vector<40x8xbf16>
    %cst = arith.constant 0.000000e+00 : f32
    %1 = vector.broadcast %cst : f32 to vector<22x16xf32>
    %2 = vector.extract_strided_slice %0 {offsets = [0, 0], sizes = [22, 8], strides = [1, 1]} : vector<40x8xbf16> to vector<22x8xbf16>
    %3 = vector.extract_strided_slice %0 {offsets = [1, 0], sizes = [22, 8], strides = [1, 1]} : vector<40x8xbf16> to vector<22x8xbf16>
    %4 = vector.extract_strided_slice %0 {offsets = [2, 0], sizes = [22, 8], strides = [1, 1]} : vector<40x8xbf16> to vector<22x8xbf16>
    %5 = tpu.concatenate %2, %3, %4 in 1 : vector<22x8xbf16>, vector<22x8xbf16>, vector<22x8xbf16> -> vector<22x24xbf16>
    %c0_1 = arith.constant 0 : index
    %c0_2 = arith.constant 0 : index
    %c0_3 = arith.constant 0 : index
    %6 = vector.load %arg2[%c0_1, %c0_2, %c0_3] : memref<3x24x16xbf16, #tpu.memory_space<vmem>>, vector<1x24x16xbf16>
    %7 = vector.shape_cast %6 : vector<1x24x16xbf16> to vector<24x16xbf16>
    %cst_4 = arith.constant dense<0.000000e+00> : vector<22x16xf32>
    %8 = tpu.matmul %5, %7, %cst_4 {dimension_numbers = #tpu.dot_dimension_numbers<[1], [0], [0], [1], [0, 0, 1, 1], [], []>} : vector<22x24xbf16>, vector<24x16xbf16>, vector<22x16xf32> -> vector<22x16xf32>
    %9 = arith.addf %1, %8 : vector<22x16xf32>
    %10 = vector.extract_strided_slice %0 {offsets = [6, 0], sizes = [22, 8], strides = [1, 1]} : vector<40x8xbf16> to vector<22x8xbf16>
    %11 = vector.extract_strided_slice %0 {offsets = [7, 0], sizes = [22, 8], strides = [1, 1]} : vector<40x8xbf16> to vector<22x8xbf16>
    %12 = vector.extract_strided_slice %0 {offsets = [8, 0], sizes = [22, 8], strides = [1, 1]} : vector<40x8xbf16> to vector<22x8xbf16>
    %13 = tpu.concatenate %10, %11, %12 in 1 : vector<22x8xbf16>, vector<22x8xbf16>, vector<22x8xbf16> -> vector<22x24xbf16>
    %c1 = arith.constant 1 : index
    %c0_5 = arith.constant 0 : index
    %c0_6 = arith.constant 0 : index
    %14 = vector.load %arg2[%c1, %c0_5, %c0_6] : memref<3x24x16xbf16, #tpu.memory_space<vmem>>, vector<1x24x16xbf16>
    %15 = vector.shape_cast %14 : vector<1x24x16xbf16> to vector<24x16xbf16>
    %cst_7 = arith.constant dense<0.000000e+00> : vector<22x16xf32>
    %16 = tpu.matmul %13, %15, %cst_7 {dimension_numbers = #tpu.dot_dimension_numbers<[1], [0], [0], [1], [0, 0, 1, 1], [], []>} : vector<22x24xbf16>, vector<24x16xbf16>, vector<22x16xf32> -> vector<22x16xf32>
    %17 = arith.addf %9, %16 : vector<22x16xf32>
    %18 = vector.extract_strided_slice %0 {offsets = [12, 0], sizes = [22, 8], strides = [1, 1]} : vector<40x8xbf16> to vector<22x8xbf16>
    %19 = vector.extract_strided_slice %0 {offsets = [13, 0], sizes = [22, 8], strides = [1, 1]} : vector<40x8xbf16> to vector<22x8xbf16>
    %20 = vector.extract_strided_slice %0 {offsets = [14, 0], sizes = [22, 8], strides = [1, 1]} : vector<40x8xbf16> to vector<22x8xbf16>
    %21 = tpu.concatenate %18, %19, %20 in 1 : vector<22x8xbf16>, vector<22x8xbf16>, vector<22x8xbf16> -> vector<22x24xbf16>
    %c2 = arith.constant 2 : index
    %c0_8 = arith.constant 0 : index
    %c0_9 = arith.constant 0 : index
    %22 = vector.load %arg2[%c2, %c0_8, %c0_9] : memref<3x24x16xbf16, #tpu.memory_space<vmem>>, vector<1x24x16xbf16>
    %23 = vector.shape_cast %22 : vector<1x24x16xbf16> to vector<24x16xbf16>
    %cst_10 = arith.constant dense<0.000000e+00> : vector<22x16xf32>
    %24 = tpu.matmul %21, %23, %cst_10 {dimension_numbers = #tpu.dot_dimension_numbers<[1], [0], [0], [1], [0, 0, 1, 1], [], []>} : vector<22x24xbf16>, vector<24x16xbf16>, vector<22x16xf32> -> vector<22x16xf32>
    %25 = arith.addf %17, %24 : vector<22x16xf32>
    %c0_11 = arith.constant 0 : index
    %c0_12 = arith.constant 0 : index
    %26 = vector.load %arg3[%c0_11, %c0_12] : memref<1x16xf32, #tpu.memory_space<vmem>>, vector<1x16xf32>
    %27 = vector.broadcast %26 : vector<1x16xf32> to vector<22x16xf32>
    %28 = arith.addf %25, %27 : vector<22x16xf32>
    %cst_13 = arith.constant 0.000000e+00 : f32
    %29 = vector.broadcast %cst_13 : f32 to vector<22x16xf32>
    %30 = arith.maximumf %28, %29 : vector<22x16xf32>
    %31 = arith.truncf %30 : vector<22x16xf32> to vector<22x16xbf16>
    %32 = vector.extract_strided_slice %31 {offsets = [0, 0], sizes = [4, 16], strides = [1, 1]} : vector<22x16xbf16> to vector<4x16xbf16>
    %c0_14 = arith.constant 0 : index
    %c0_15 = arith.constant 0 : index
    %c0_16 = arith.constant 0 : index
    %33 = vector.load %arg4[%c0_14, %c0_15, %c0_16] : memref<1x16x16xbf16, #tpu.memory_space<vmem>>, vector<1x4x16xbf16>
    %34 = vector.shape_cast %33 : vector<1x4x16xbf16> to vector<4x16xbf16>
    %35 = vector.shape_cast %32 : vector<4x16xbf16> to vector<1x4x16xbf16>
    tpu.vector_store %arg4[%c0_14, %c0_15, %c0_16], %35 {strides = array<i32>} : memref<1x16x16xbf16, #tpu.memory_space<vmem>>, vector<1x4x16xbf16>,
    %36 = vector.extract_strided_slice %31 {offsets = [6, 0], sizes = [4, 16], strides = [1, 1]} : vector<22x16xbf16> to vector<4x16xbf16>
    %c0_17 = arith.constant 0 : index
    %c4 = arith.constant 4 : index
    %c0_18 = arith.constant 0 : index
    %37 = vector.load %arg4[%c0_17, %c4, %c0_18] : memref<1x16x16xbf16, #tpu.memory_space<vmem>>, vector<1x4x16xbf16>
    %38 = vector.shape_cast %37 : vector<1x4x16xbf16> to vector<4x16xbf16>
    %39 = vector.shape_cast %36 : vector<4x16xbf16> to vector<1x4x16xbf16>
    tpu.vector_store %arg4[%c0_17, %c4, %c0_18], %39 {strides = array<i32>} : memref<1x16x16xbf16, #tpu.memory_space<vmem>>, vector<1x4x16xbf16>,
    %40 = vector.extract_strided_slice %31 {offsets = [12, 0], sizes = [4, 16], strides = [1, 1]} : vector<22x16xbf16> to vector<4x16xbf16>
    %c0_19 = arith.constant 0 : index
    %c8 = arith.constant 8 : index
    %c0_20 = arith.constant 0 : index
    %41 = vector.load %arg4[%c0_19, %c8, %c0_20] : memref<1x16x16xbf16, #tpu.memory_space<vmem>>, vector<1x4x16xbf16>
    %42 = vector.shape_cast %41 : vector<1x4x16xbf16> to vector<4x16xbf16>
    %43 = vector.shape_cast %40 : vector<4x16xbf16> to vector<1x4x16xbf16>
    tpu.vector_store %arg4[%c0_19, %c8, %c0_20], %43 {strides = array<i32>} : memref<1x16x16xbf16, #tpu.memory_space<vmem>>, vector<1x4x16xbf16>,
    %44 = vector.extract_strided_slice %31 {offsets = [18, 0], sizes = [4, 16], strides = [1, 1]} : vector<22x16xbf16> to vector<4x16xbf16>
    %c0_21 = arith.constant 0 : index
    %c12 = arith.constant 12 : index
    %c0_22 = arith.constant 0 : index
    %45 = vector.load %arg4[%c0_21, %c12, %c0_22] : memref<1x16x16xbf16, #tpu.memory_space<vmem>>, vector<1x4x16xbf16>
    %46 = vector.shape_cast %45 : vector<1x4x16xbf16> to vector<4x16xbf16>
    %47 = vector.shape_cast %44 : vector<4x16xbf16> to vector<1x4x16xbf16>
    tpu.vector_store %arg4[%c0_21, %c12, %c0_22], %47 {strides = array<i32>} : memref<1x16x16xbf16, #tpu.memory_space<vmem>>, vector<1x4x16xbf16>,
    return
  }
  func.func @transform_0(%arg0: i32) -> (i32, i32) {
    %c0_i32 = arith.constant 0 : i32
    %c0_i32_0 = arith.constant 0 : i32
    return %arg0, %c0_i32 : i32, i32
  }
  func.func @transform_1(%arg0: i32) -> (i32, i32, i32) {
    %c0_i32 = arith.constant 0 : i32
    %c0_i32_0 = arith.constant 0 : i32
    %c0_i32_1 = arith.constant 0 : i32
    %c0_i32_2 = arith.constant 0 : i32
    return %c0_i32, %c0_i32_0, %c0_i32_1 : i32, i32, i32
  }
  func.func @transform_2(%arg0: i32) -> (i32, i32) {
    %c0_i32 = arith.constant 0 : i32
    %c0_i32_0 = arith.constant 0 : i32
    %c0_i32_1 = arith.constant 0 : i32
    return %c0_i32, %c0_i32_0 : i32, i32
  }
  func.func @transform_3(%arg0: i32) -> (i32, i32, i32) {
    %c0_i32 = arith.constant 0 : i32
    %c0_i32_0 = arith.constant 0 : i32
    %c0_i32_1 = arith.constant 0 : i32
    return %arg0, %c0_i32, %c0_i32_0 : i32, i32, i32
  }
}

module attributes {stable_mosaic.version = 11 : i64} {
  func.func @_conv3x3_bias_relu_kernel(%arg0: i32, %arg1: memref<40x8xbf16, #tpu.memory_space<vmem>>, %arg2: memref<3x24x16xbf16, #tpu.memory_space<vmem>>, %arg3: memref<1x16xf32, #tpu.memory_space<vmem>>, %arg4: memref<1x16x16xbf16, #tpu.memory_space<vmem>>) attributes {dimension_semantics = [#tpu.dimension_semantics<parallel>], iteration_bounds = array<i64: 2>, scalar_prefetch = 0 : i64, scratch_operands = 0 : i64, tpu.core_type = #tpu.core_type<tc>, window_params = [{transform_indices = @transform_0, window_bounds = array<i64: 40, 8>}, {pipeline_mode = #tpu.pipeline_mode<synchronous>, transform_indices = @transform_1, window_bounds = array<i64: 3, 24, 16>}, {pipeline_mode = #tpu.pipeline_mode<synchronous>, transform_indices = @transform_2, window_bounds = array<i64: 1, 16>}, {transform_indices = @transform_3, window_bounds = array<i64: 1, 16, 16>}]} {
    %c0 = arith.constant 0 : index
    %c0_0 = arith.constant 0 : index
    %0 = vector.load %arg1[%c0, %c0_0] : memref<40x8xbf16, #tpu.memory_space<vmem>>, vector<40x8xbf16>
    %cst = arith.constant 0.000000e+00 : f32
    %1 = vector.broadcast %cst : f32 to vector<22x16xf32>
    %2 = vector.extract_strided_slice %0 {offsets = [0, 0], sizes = [22, 8], strides = [1, 1]} : vector<40x8xbf16> to vector<22x8xbf16>
    %c0_1 = arith.constant 0 : index
    %c0_2 = arith.constant 0 : index
    %c0_3 = arith.constant 0 : index
    %3 = vector.load %arg2[%c0_1, %c0_2, %c0_3] : memref<3x24x16xbf16, #tpu.memory_space<vmem>>, vector<1x8x16xbf16>
    %4 = vector.shape_cast %3 : vector<1x8x16xbf16> to vector<8x16xbf16>
    %cst_4 = arith.constant dense<0.000000e+00> : vector<22x16xf32>
    %5 = tpu.matmul %2, %4, %cst_4 {dimension_numbers = #tpu.dot_dimension_numbers<[1], [0], [0], [1], [0, 0, 1, 1], [], []>} : vector<22x8xbf16>, vector<8x16xbf16>, vector<22x16xf32> -> vector<22x16xf32>
    %6 = arith.addf %1, %5 : vector<22x16xf32>
    %7 = vector.extract_strided_slice %0 {offsets = [1, 0], sizes = [22, 8], strides = [1, 1]} : vector<40x8xbf16> to vector<22x8xbf16>
    %c0_5 = arith.constant 0 : index
    %c8 = arith.constant 8 : index
    %c0_6 = arith.constant 0 : index
    %8 = vector.load %arg2[%c0_5, %c8, %c0_6] : memref<3x24x16xbf16, #tpu.memory_space<vmem>>, vector<1x8x16xbf16>
    %9 = vector.shape_cast %8 : vector<1x8x16xbf16> to vector<8x16xbf16>
    %cst_7 = arith.constant dense<0.000000e+00> : vector<22x16xf32>
    %10 = tpu.matmul %7, %9, %cst_7 {dimension_numbers = #tpu.dot_dimension_numbers<[1], [0], [0], [1], [0, 0, 1, 1], [], []>} : vector<22x8xbf16>, vector<8x16xbf16>, vector<22x16xf32> -> vector<22x16xf32>
    %11 = arith.addf %6, %10 : vector<22x16xf32>
    %12 = vector.extract_strided_slice %0 {offsets = [2, 0], sizes = [22, 8], strides = [1, 1]} : vector<40x8xbf16> to vector<22x8xbf16>
    %c0_8 = arith.constant 0 : index
    %c16 = arith.constant 16 : index
    %c0_9 = arith.constant 0 : index
    %13 = vector.load %arg2[%c0_8, %c16, %c0_9] : memref<3x24x16xbf16, #tpu.memory_space<vmem>>, vector<1x8x16xbf16>
    %14 = vector.shape_cast %13 : vector<1x8x16xbf16> to vector<8x16xbf16>
    %cst_10 = arith.constant dense<0.000000e+00> : vector<22x16xf32>
    %15 = tpu.matmul %12, %14, %cst_10 {dimension_numbers = #tpu.dot_dimension_numbers<[1], [0], [0], [1], [0, 0, 1, 1], [], []>} : vector<22x8xbf16>, vector<8x16xbf16>, vector<22x16xf32> -> vector<22x16xf32>
    %16 = arith.addf %11, %15 : vector<22x16xf32>
    %17 = vector.extract_strided_slice %0 {offsets = [6, 0], sizes = [22, 8], strides = [1, 1]} : vector<40x8xbf16> to vector<22x8xbf16>
    %c1 = arith.constant 1 : index
    %c0_11 = arith.constant 0 : index
    %c0_12 = arith.constant 0 : index
    %18 = vector.load %arg2[%c1, %c0_11, %c0_12] : memref<3x24x16xbf16, #tpu.memory_space<vmem>>, vector<1x8x16xbf16>
    %19 = vector.shape_cast %18 : vector<1x8x16xbf16> to vector<8x16xbf16>
    %cst_13 = arith.constant dense<0.000000e+00> : vector<22x16xf32>
    %20 = tpu.matmul %17, %19, %cst_13 {dimension_numbers = #tpu.dot_dimension_numbers<[1], [0], [0], [1], [0, 0, 1, 1], [], []>} : vector<22x8xbf16>, vector<8x16xbf16>, vector<22x16xf32> -> vector<22x16xf32>
    %21 = arith.addf %16, %20 : vector<22x16xf32>
    %22 = vector.extract_strided_slice %0 {offsets = [7, 0], sizes = [22, 8], strides = [1, 1]} : vector<40x8xbf16> to vector<22x8xbf16>
    %c1_14 = arith.constant 1 : index
    %c8_15 = arith.constant 8 : index
    %c0_16 = arith.constant 0 : index
    %23 = vector.load %arg2[%c1_14, %c8_15, %c0_16] : memref<3x24x16xbf16, #tpu.memory_space<vmem>>, vector<1x8x16xbf16>
    %24 = vector.shape_cast %23 : vector<1x8x16xbf16> to vector<8x16xbf16>
    %cst_17 = arith.constant dense<0.000000e+00> : vector<22x16xf32>
    %25 = tpu.matmul %22, %24, %cst_17 {dimension_numbers = #tpu.dot_dimension_numbers<[1], [0], [0], [1], [0, 0, 1, 1], [], []>} : vector<22x8xbf16>, vector<8x16xbf16>, vector<22x16xf32> -> vector<22x16xf32>
    %26 = arith.addf %21, %25 : vector<22x16xf32>
    %27 = vector.extract_strided_slice %0 {offsets = [8, 0], sizes = [22, 8], strides = [1, 1]} : vector<40x8xbf16> to vector<22x8xbf16>
    %c1_18 = arith.constant 1 : index
    %c16_19 = arith.constant 16 : index
    %c0_20 = arith.constant 0 : index
    %28 = vector.load %arg2[%c1_18, %c16_19, %c0_20] : memref<3x24x16xbf16, #tpu.memory_space<vmem>>, vector<1x8x16xbf16>
    %29 = vector.shape_cast %28 : vector<1x8x16xbf16> to vector<8x16xbf16>
    %cst_21 = arith.constant dense<0.000000e+00> : vector<22x16xf32>
    %30 = tpu.matmul %27, %29, %cst_21 {dimension_numbers = #tpu.dot_dimension_numbers<[1], [0], [0], [1], [0, 0, 1, 1], [], []>} : vector<22x8xbf16>, vector<8x16xbf16>, vector<22x16xf32> -> vector<22x16xf32>
    %31 = arith.addf %26, %30 : vector<22x16xf32>
    %32 = vector.extract_strided_slice %0 {offsets = [12, 0], sizes = [22, 8], strides = [1, 1]} : vector<40x8xbf16> to vector<22x8xbf16>
    %c2 = arith.constant 2 : index
    %c0_22 = arith.constant 0 : index
    %c0_23 = arith.constant 0 : index
    %33 = vector.load %arg2[%c2, %c0_22, %c0_23] : memref<3x24x16xbf16, #tpu.memory_space<vmem>>, vector<1x8x16xbf16>
    %34 = vector.shape_cast %33 : vector<1x8x16xbf16> to vector<8x16xbf16>
    %cst_24 = arith.constant dense<0.000000e+00> : vector<22x16xf32>
    %35 = tpu.matmul %32, %34, %cst_24 {dimension_numbers = #tpu.dot_dimension_numbers<[1], [0], [0], [1], [0, 0, 1, 1], [], []>} : vector<22x8xbf16>, vector<8x16xbf16>, vector<22x16xf32> -> vector<22x16xf32>
    %36 = arith.addf %31, %35 : vector<22x16xf32>
    %37 = vector.extract_strided_slice %0 {offsets = [13, 0], sizes = [22, 8], strides = [1, 1]} : vector<40x8xbf16> to vector<22x8xbf16>
    %c2_25 = arith.constant 2 : index
    %c8_26 = arith.constant 8 : index
    %c0_27 = arith.constant 0 : index
    %38 = vector.load %arg2[%c2_25, %c8_26, %c0_27] : memref<3x24x16xbf16, #tpu.memory_space<vmem>>, vector<1x8x16xbf16>
    %39 = vector.shape_cast %38 : vector<1x8x16xbf16> to vector<8x16xbf16>
    %cst_28 = arith.constant dense<0.000000e+00> : vector<22x16xf32>
    %40 = tpu.matmul %37, %39, %cst_28 {dimension_numbers = #tpu.dot_dimension_numbers<[1], [0], [0], [1], [0, 0, 1, 1], [], []>} : vector<22x8xbf16>, vector<8x16xbf16>, vector<22x16xf32> -> vector<22x16xf32>
    %41 = arith.addf %36, %40 : vector<22x16xf32>
    %42 = vector.extract_strided_slice %0 {offsets = [14, 0], sizes = [22, 8], strides = [1, 1]} : vector<40x8xbf16> to vector<22x8xbf16>
    %c2_29 = arith.constant 2 : index
    %c16_30 = arith.constant 16 : index
    %c0_31 = arith.constant 0 : index
    %43 = vector.load %arg2[%c2_29, %c16_30, %c0_31] : memref<3x24x16xbf16, #tpu.memory_space<vmem>>, vector<1x8x16xbf16>
    %44 = vector.shape_cast %43 : vector<1x8x16xbf16> to vector<8x16xbf16>
    %cst_32 = arith.constant dense<0.000000e+00> : vector<22x16xf32>
    %45 = tpu.matmul %42, %44, %cst_32 {dimension_numbers = #tpu.dot_dimension_numbers<[1], [0], [0], [1], [0, 0, 1, 1], [], []>} : vector<22x8xbf16>, vector<8x16xbf16>, vector<22x16xf32> -> vector<22x16xf32>
    %46 = arith.addf %41, %45 : vector<22x16xf32>
    %c0_33 = arith.constant 0 : index
    %c0_34 = arith.constant 0 : index
    %47 = vector.load %arg3[%c0_33, %c0_34] : memref<1x16xf32, #tpu.memory_space<vmem>>, vector<1x16xf32>
    %48 = vector.broadcast %47 : vector<1x16xf32> to vector<22x16xf32>
    %49 = arith.addf %46, %48 : vector<22x16xf32>
    %cst_35 = arith.constant 0.000000e+00 : f32
    %50 = vector.broadcast %cst_35 : f32 to vector<22x16xf32>
    %51 = arith.maximumf %49, %50 : vector<22x16xf32>
    %52 = arith.truncf %51 : vector<22x16xf32> to vector<22x16xbf16>
    %53 = vector.extract_strided_slice %52 {offsets = [0, 0], sizes = [4, 16], strides = [1, 1]} : vector<22x16xbf16> to vector<4x16xbf16>
    %c0_36 = arith.constant 0 : index
    %c0_37 = arith.constant 0 : index
    %c0_38 = arith.constant 0 : index
    %54 = vector.load %arg4[%c0_36, %c0_37, %c0_38] : memref<1x16x16xbf16, #tpu.memory_space<vmem>>, vector<1x4x16xbf16>
    %55 = vector.shape_cast %54 : vector<1x4x16xbf16> to vector<4x16xbf16>
    %56 = vector.shape_cast %53 : vector<4x16xbf16> to vector<1x4x16xbf16>
    tpu.vector_store %arg4[%c0_36, %c0_37, %c0_38], %56 {strides = array<i32>} : memref<1x16x16xbf16, #tpu.memory_space<vmem>>, vector<1x4x16xbf16>,
    %57 = vector.extract_strided_slice %52 {offsets = [6, 0], sizes = [4, 16], strides = [1, 1]} : vector<22x16xbf16> to vector<4x16xbf16>
    %c0_39 = arith.constant 0 : index
    %c4 = arith.constant 4 : index
    %c0_40 = arith.constant 0 : index
    %58 = vector.load %arg4[%c0_39, %c4, %c0_40] : memref<1x16x16xbf16, #tpu.memory_space<vmem>>, vector<1x4x16xbf16>
    %59 = vector.shape_cast %58 : vector<1x4x16xbf16> to vector<4x16xbf16>
    %60 = vector.shape_cast %57 : vector<4x16xbf16> to vector<1x4x16xbf16>
    tpu.vector_store %arg4[%c0_39, %c4, %c0_40], %60 {strides = array<i32>} : memref<1x16x16xbf16, #tpu.memory_space<vmem>>, vector<1x4x16xbf16>,
    %61 = vector.extract_strided_slice %52 {offsets = [12, 0], sizes = [4, 16], strides = [1, 1]} : vector<22x16xbf16> to vector<4x16xbf16>
    %c0_41 = arith.constant 0 : index
    %c8_42 = arith.constant 8 : index
    %c0_43 = arith.constant 0 : index
    %62 = vector.load %arg4[%c0_41, %c8_42, %c0_43] : memref<1x16x16xbf16, #tpu.memory_space<vmem>>, vector<1x4x16xbf16>
    %63 = vector.shape_cast %62 : vector<1x4x16xbf16> to vector<4x16xbf16>
    %64 = vector.shape_cast %61 : vector<4x16xbf16> to vector<1x4x16xbf16>
    tpu.vector_store %arg4[%c0_41, %c8_42, %c0_43], %64 {strides = array<i32>} : memref<1x16x16xbf16, #tpu.memory_space<vmem>>, vector<1x4x16xbf16>,
    %65 = vector.extract_strided_slice %52 {offsets = [18, 0], sizes = [4, 16], strides = [1, 1]} : vector<22x16xbf16> to vector<4x16xbf16>
    %c0_44 = arith.constant 0 : index
    %c12 = arith.constant 12 : index
    %c0_45 = arith.constant 0 : index
    %66 = vector.load %arg4[%c0_44, %c12, %c0_45] : memref<1x16x16xbf16, #tpu.memory_space<vmem>>, vector<1x4x16xbf16>
    %67 = vector.shape_cast %66 : vector<1x4x16xbf16> to vector<4x16xbf16>
    %68 = vector.shape_cast %65 : vector<4x16xbf16> to vector<1x4x16xbf16>
    tpu.vector_store %arg4[%c0_44, %c12, %c0_45], %68 {strides = array<i32>} : memref<1x16x16xbf16, #tpu.memory_space<vmem>>, vector<1x4x16xbf16>,
    return
  }
  func.func @transform_0(%arg0: i32) -> (i32, i32) {
    %c0_i32 = arith.constant 0 : i32
    %c0_i32_0 = arith.constant 0 : i32
    return %arg0, %c0_i32 : i32, i32
  }
  func.func @transform_1(%arg0: i32) -> (i32, i32, i32) {
    %c0_i32 = arith.constant 0 : i32
    %c0_i32_0 = arith.constant 0 : i32
    %c0_i32_1 = arith.constant 0 : i32
    %c0_i32_2 = arith.constant 0 : i32
    return %c0_i32, %c0_i32_0, %c0_i32_1 : i32, i32, i32
  }
  func.func @transform_2(%arg0: i32) -> (i32, i32) {
    %c0_i32 = arith.constant 0 : i32
    %c0_i32_0 = arith.constant 0 : i32
    %c0_i32_1 = arith.constant 0 : i32
    return %c0_i32, %c0_i32_0 : i32, i32
  }
  func.func @transform_3(%arg0: i32) -> (i32, i32, i32) {
    %c0_i32 = arith.constant 0 : i32
    %c0_i32_0 = arith.constant 0 : i32
    %c0_i32_1 = arith.constant 0 : i32
    return %arg0, %c0_i32, %c0_i32_0 : i32, i32, i32
  }
}

</mosaic_0001>

<llo_original>
// kernel: _conv_impl.1
$region0: #{_conv_impl.1}
  #allocation0 [shape = 'u32[]', space=smem, size = 0x4, offset = 0x4, fixed_abs, tag = 'smem constant byte address 0x4 - core index']
  #allocation1 [shape = 'u32[144,128]{1,0:T(1,128)}', space=vmem, size = 0x12000, scoped, tag = 'internal scratch']
  %s0 = inlined_call_operand.vmem [shape: bf16[80,8], index: 0, kind: input, shape index: {}]
  %s1 = inlined_call_operand.vmem [shape: bf16[3,24,16], index: 1, kind: input, shape index: {}]
  %s2 = inlined_call_operand.vmem [shape: f32[1,16], index: 2, kind: input, shape index: {}]
  %s3 = inlined_call_operand.hbm [shape: bf16[2,16,16], index: 3, kind: output, shape index: {}]
  %s4 = sld [smem:[#allocation0]]
  $region45: #{_conv_impl.1} parent=0
    _
  %s6 = ssub.s32 1, %s4
  %s7 = scalar_select 0, %s6, %s4
  $region1: #{_conv_impl.1} parent=0
    #allocation2 [shape = 'u8[8192]{0}', space=vmem, size = 0x2000, scoped, tag = 'output window, operand 0']
    #allocation3 [shape = 's32[2]{0}', space=sflag, size = 0x8, scoped, tag = 'scoped memory for _conv_impl.1']
    %8 = vsyncpa [#allocation3], 0
    %s9 = scalar_lea.sflag [#allocation3], 1
    %10 = vsyncpa %s9, 0
    loop: start=0, step=1, limit=4
    $region2: #{_conv_impl.1} parent=1 // loop_pre_header
      _
    $region3: #{_conv_impl.1} parent=1 // loop_header
      %s12 = sphi 0, %s16
      %p13 = scmp.ge.s32.totalorder %s12, 4
      %s22 = sphi 0, %s24
      %s25 = sphi 0, %s22
      %s26 = sphi 0, %s25
      %s42 = sphi 0, %s26
      %s46 = sphi 0, %s46
      %s48 = sphi 0, %s46
      %s49 = sphi 0, %s48
      %s63 = sphi 0, %s49
      %s67 = sphi 0, %s67
      %s69 = sphi 0, %s67
      %s70 = sphi 0, %s69
      %s84 = sphi 0, %s70
      %s90 = sphi 0, %s92
      %s93 = sphi 0, %s90
      %s94 = sphi 0, %s93
      %s110 = sphi 0, %s94
    $region4: #{_conv_impl.1} parent=1 // loop_header_branch
      %15 = sbr.rel (%p13) target = $region8
    $region5: #{_conv_impl.1} parent=1 // loop_body
      %s17 = ssub.s32 %s12, 1
      %s18 = ssub.s32 %s12, 2
      %s19 = sadd.s32 %s12, 1
      %s20 = ssub.s32 %s12, %s19
      %p21 = scmp.eq.s32.totalorder %s20, 0
      %s23 = sadd.s32 %s22, 1
      %s24 = scalar_select %p21, %s22, %s23
      %p27 = pneg %p21
      %p28 = scmp.eq.s32.totalorder %s12, 1
      %p29 = por %p27, %p28
      %p30 = scmp.ne.s32.totalorder %s22, %s25
      %p31 = scmp.eq.s32.totalorder %s12, 0
      %p32 = por %p30, %p31
      %p33 = scmp.ne.s32.totalorder %s22, %s25
      %p34 = scmp.eq.s32.totalorder %s17, 1
      %p35 = por %p33, %p34
      %p36 = scmp.ne.s32.totalorder %s25, %s26
      %p37 = scmp.eq.s32.totalorder %s17, 0
      %p38 = por %p36, %p37
      %p39 = scmp.ne.s32.totalorder %s25, %s26
      %p40 = scmp.eq.s32.totalorder %s18, 1
      %p41 = por %p39, %p40
      %p43 = scmp.ne.s32.totalorder %s26, %s42
      %p44 = scmp.eq.s32.totalorder %s18, 0
      %p45 = por %p43, %p44
      %s47 = sadd.s32 %s46, 1
      %p50 = scmp.eq.s32.totalorder %s12, 1
      %p51 = scmp.ne.s32.totalorder %s46, %s48
      %p52 = scmp.eq.s32.totalorder %s12, 0
      %p53 = por %p51, %p52
      %p54 = scmp.ne.s32.totalorder %s46, %s48
      %p55 = scmp.eq.s32.totalorder %s17, 1
      %p56 = por %p54, %p55
      %p57 = scmp.ne.s32.totalorder %s48, %s49
      %p58 = scmp.eq.s32.totalorder %s17, 0
      %p59 = por %p57, %p58
      %p60 = scmp.ne.s32.totalorder %s48, %s49
      %p61 = scmp.eq.s32.totalorder %s18, 1
      %p62 = por %p60, %p61
      %p64 = scmp.ne.s32.totalorder %s49, %s63
      %p65 = scmp.eq.s32.totalorder %s18, 0
      %p66 = por %p64, %p65
      %s68 = sadd.s32 %s67, 1
      %p71 = scmp.eq.s32.totalorder %s12, 1
      %p72 = scmp.ne.s32.totalorder %s67, %s69
      %p73 = scmp.eq.s32.totalorder %s12, 0
      %p74 = por %p72, %p73
      %p75 = scmp.ne.s32.totalorder %s67, %s69
      %p76 = scmp.eq.s32.totalorder %s17, 1
      %p77 = por %p75, %p76
      %p78 = scmp.ne.s32.totalorder %s69, %s70
      %p79 = scmp.eq.s32.totalorder %s17, 0
      %p80 = por %p78, %p79
      %p81 = scmp.ne.s32.totalorder %s69, %s70
      %p82 = scmp.eq.s32.totalorder %s18, 1
      %p83 = por %p81, %p82
      %p85 = scmp.ne.s32.totalorder %s70, %s84
      %p86 = scmp.eq.s32.totalorder %s18, 0
      %p87 = por %p85, %p86
      %s88 = ssub.s32 %s12, %s19
      %p89 = scmp.eq.s32.totalorder %s88, 0
      %s91 = sadd.s32 %s90, 1
      %s92 = scalar_select %p89, %s90, %s91
      %p95 = pneg %p89
      %p96 = scmp.eq.s32.totalorder %s12, 1
      %p97 = por %p95, %p96
      %p98 = scmp.ne.s32.totalorder %s90, %s93
      %p99 = scmp.eq.s32.totalorder %s12, 0
      %p100 = por %p98, %p99
      %p101 = scmp.ne.s32.totalorder %s90, %s93
      %p102 = scmp.eq.s32.totalorder %s17, 1
      %p103 = por %p101, %p102
      %p104 = scmp.ne.s32.totalorder %s93, %s94
      %p105 = scmp.eq.s32.totalorder %s17, 0
      %p106 = por %p104, %p105
      %p107 = scmp.ne.s32.totalorder %s93, %s94
      %p108 = scmp.eq.s32.totalorder %s18, 1
      %p109 = por %p107, %p108
      %p111 = scmp.ne.s32.totalorder %s94, %s110
      %p112 = scmp.eq.s32.totalorder %s18, 0
      %p113 = por %p111, %p112
      %p114 = scmp.le.s32.totalorder 1, %s12
      %p115 = scmp.lt.s32.totalorder %s12, 3
      %p116 = pnand %p114, %p115
      %p117 = pneg %p116
      // Predicated region
      $region9: #{_conv_impl.1} parent=5 // pred_check
        _
      $region10: #{_conv_impl.1} parent=5 // pred_check_branch
        %119 = sbr.rel (%p116) target = $region12
      $region11: #{_conv_impl.1} parent=5 // pred_region
        %s120 = ssub.s32 %s12, 1
        // Predicated region
        $region13: #{_conv_impl.1} parent=11 // pred_check
          %p121 = pneg %p59
        $region14: #{_conv_impl.1} parent=11 // pred_check_branch
          %123 = sbr.rel (%p121) target = $region16
        $region15: #{_conv_impl.1} parent=11 // pred_region
          _
        $region16: #{_conv_impl.1} parent=11 // pred_fallthru
          _
        // Predicated region
        $region17: #{_conv_impl.1} parent=11 // pred_check
          %p124 = pneg %p80
        $region18: #{_conv_impl.1} parent=11 // pred_check_branch
          %126 = sbr.rel (%p124) target = $region20
        $region19: #{_conv_impl.1} parent=11 // pred_region
          _
        $region20: #{_conv_impl.1} parent=11 // pred_fallthru
          _
      $region12: #{_conv_impl.1} parent=5 // pred_fallthru
        _
      %p127 = scmp.lt.s32.totalorder %s12, 2
      // Predicated region
      $region21: #{_conv_impl.1} parent=5 // pred_check
        %p128 = pneg %p127
      $region22: #{_conv_impl.1} parent=5 // pred_check_branch
        %130 = sbr.rel (%p128) target = $region24
      $region23: #{_conv_impl.1} parent=5 // pred_region
        // Predicated region
        $region25: #{_conv_impl.1} parent=23 // pred_check
          %p131 = pneg %p32
        $region26: #{_conv_impl.1} parent=23 // pred_check_branch
          %133 = sbr.rel (%p131) target = $region28
        $region27: #{_conv_impl.1} parent=23 // pred_region
          %s134 = smul.u32 5, %s12
          %p135 = scmp.lt.s32.totalorder %s134, 9
          %s136 = scalar_select %p135, %s134, 9
          %s137 = smul.addr %s136, 4
          %s138 = scalar_lea.vmem %s0, %s137
          %s139 = smul.u32 5, %s12
        $region28: #{_conv_impl.1} parent=23 // pred_fallthru
          _
      $region24: #{_conv_impl.1} parent=5 // pred_fallthru
        _
      %p140 = scmp.le.s32.totalorder 1, %s12
      %p141 = scmp.lt.s32.totalorder %s12, 3
      %p142 = pnand %p140, %p141
      %p143 = pneg %p142
      // Predicated region
      $region29: #{_conv_impl.1} parent=5 // pred_check
        _
      $region30: #{_conv_impl.1} parent=5 // pred_check_branch
        %145 = sbr.rel (%p142) target = $region32
      $region31: #{_conv_impl.1} parent=5 // pred_region
        %s146 = ssub.s32 %s12, 1
        %s147 = smul.u32 5, %s17
        %p148 = scmp.lt.s32.totalorder %s147, 9
        %s149 = scalar_select %p148, %s147, 9
        %s150 = smul.addr %s149, 4
        %s151 = scalar_lea.vmem %s0, %s150
        %p152 = pneg %p38
        %p153 = pneg %p35
        %p154 = pneg %p59
        %p155 = pneg %p56
        %p156 = pneg %p80
        %p157 = pneg %p77
        %p158 = pneg %p106
        %p159 = pneg %p103
        %s160 = sand.u32 %s93, 1
        %s161 = scalar_lea.sflag [#allocation3], %s160
        %s162 = sand.u32 %s93, 1
        %s163 = smul.addr %s162, 8
        %s164 = scalar_lea.vmem [#allocation2], %s163
        %s165 = smul.u32 5, %s17
        %p166 = scmp.lt.s32.totalorder %s165, 9
        %s167 = scalar_select %p166, %s165, 9
        %s168 = smul.addr %s167, 4
        %s169 = scalar_lea.vmem %s0, %s168
        %s170 = smul.u32 5, %s17
        %v172 = vld [vmem:[%s169] sm:$0xf]
        %v173 = vld [vmem:[%s169 + $0x4] sm:$0xf]
        %v174 = vld [vmem:[%s169 + $0x8] sm:$0xf]
        %v175 = vld [vmem:[%s169 + $0xc] sm:$0xf]
        %v176 = vld [vmem:[%s169 + $0x10] sm:$0xf]
        %v180 = vunpack.c.l.b16 %v172
        %v181 = vunpack.c.l.b16 %v173
        %v182 = vunpack.c.l.b16 %v174
        %v183 = vpack.c.b16 %v181, %v180
        %v184 = vpack.c.b16 %v182, %v182
        %vm185 = vsmask.f32 7424
        %v187 = vshrl.u32 %v183, 16
        %v189 = vshll.u32 %v183, 16
        %v191 = vrot.slane %v189, 1
        %v192 = vor.u32 %v187, %v191
        %v194 = vshll.u32 %v184, 16
        %v196 = vrot.slane %v194, 1
        %v197 = vsel %vm185, %v192, %v196
        %v198 = vshrl.u32 %v184, 16
        %v200 = vor.u32 %v198, %v196
        %201 = vrot.lane.b32.xlu0 %v197, 8
        %v202 = vpop.permute.xlu0 %201
        %203 = vrot.lane.b32.xlu0 %v200, 8
        %v204 = vpop.permute.xlu0 %203
        %vm205 = vcmask 1046528
        %v206 = vrot.slane %v183, 1
        %v207 = vrot.slane %v184, 1
        %v208 = vsel %vm205, %v206, %v207
        %209 = vrot.lane.b32.xlu0 %v208, 16
        %v210 = vpop.permute.xlu0 %209
        %211 = vrot.lane.b32.xlu0 %v207, 16
        %v212 = vpop.permute.xlu0 %211
        %vm213 = vcmask 64512
        %v215 = vsel %vm213, %v183, %v202
        %v217 = vsel %vm213, %v184, %v204
        %vm218 = vcmask 130048
        %v220 = vsel %vm218, %v215, %v210
        %v222 = vsel %vm218, %v217, %v212
        %v223 = vld [vmem:[%s1] sm:$0xf]
        %v224 = vld [vmem:[%s1 + $0x4] sm:$0xf]
        %v225 = vld [vmem:[%s1 + $0x8] sm:$0xf]
        %v227 = vunpack.c.l.b16 %v175
        %v228 = vpack.c.b16 %v227, %v182
        %v230 = vshll.u32 %v228, 16
        %v232 = vrot.slane %v230, 1
        %v233 = vsel %vm185, %v192, %v232
        %v234 = vshrl.u32 %v228, 16
        %v236 = vor.u32 %v234, %v232
        %237 = vrot.lane.b32.xlu0 %v233, 8
        %v238 = vpop.permute.xlu0 %237
        %239 = vrot.lane.b32.xlu0 %v236, 8
        %v240 = vpop.permute.xlu0 %239
        %v241 = vpack.c.b16 %v182, %v181
        %v242 = vpack.c.b16 %v227, %v227
        %vm243 = vcmask 1042432
        %v244 = vrot.slane %v241, 5
        %v245 = vrot.slane %v242, 5
        %v246 = vsel %vm243, %v244, %v245
        %247 = vrot.lane.b32.xlu0 %v244, 16
        %v248 = vpop.permute.xlu0 %247
        %249 = vrot.lane.b32.xlu0 %v246, 16
        %v250 = vpop.permute.xlu0 %249
        %v252 = vsel %vm213, %v183, %v238
        %v254 = vsel %vm213, %v228, %v240
        %v256 = vsel %vm218, %v252, %v248
        %v258 = vsel %vm218, %v254, %v250
        %s259 = scalar_lea.vmem %s1, 12
        %v260 = vld [vmem:[%s259] sm:$0xf]
        %v261 = vld [vmem:[%s259 + $0x4] sm:$0xf]
        %v262 = vld [vmem:[%s259 + $0x8] sm:$0xf]
        %vm265 = vcmask 1044480
        %v266 = vrot.slane %v256, 3
        %v267 = vrot.slane %v258, 3
        %v268 = vsel %vm265, %v266, %v267
        %v272 = vunpack.c.l.b16 %v260
        %v273 = vunpack.c.l.b16 %v261
        %v274 = vunpack.c.l.b16 %v262
        %v275 = vpack.c.b16 %v273, %v272
        %v276 = vpack.c.b16 %v274, %v274
        %vm278 = vcmask 195584
        %v280 = vsel %vm278, %v268, 0
        %v283 = vsel %vm278, %v267, 0
        %vm285 = vcmask 1043456
        %v287 = vsel %vm285, %v276, 0
        %289 = vmatprep.subr.bf16.mxu0 0
        %290 = vmatpush1.bf16.msra.mxu0 0
        %291 = vmatprep.subr.bf16.mxu0 0
        %292 = vmatpush1.bf16.msra.mxu0 0
        %293 = vmatprep.subr.bf16.mxu0 0
        %294 = vmatpush1.bf16.msra.mxu0 0
        %295 = vmatprep.subr.bf16.mxu0 0
        %296 = vmatpush1.bf16.msra.mxu0 0
        %297 = vmatprep.subr.bf16.mxu0 0
        %298 = vmatpush1.bf16.msra.mxu0 0
        %299 = vmatprep.subr.bf16.mxu0 0
        %300 = vmatpush1.bf16.msra.mxu0 0
        %301 = vmatprep.subr.bf16.mxu0 0
        %302 = vmatpush1.bf16.msra.mxu0 %v287
        %303 = vmatprep.subr.bf16.mxu0 0
        %304 = vmatpush1.bf16.msra.mxu0 %v275
        %305 = vmatprep.subr.bf16.mxu0 0
        %306 = vmatpush2.bf16.msra.mxu0 0
        %307 = vmatprep.subr.bf16.mxu0 0
        %308 = vmatpush2.bf16.msra.mxu0 0
        %309 = vmatprep.subr.bf16.mxu0 0
        %310 = vmatpush2.bf16.msra.mxu0 0
        %311 = vmatprep.subr.bf16.mxu0 0
        %312 = vmatpush2.bf16.msra.mxu0 0
        %313 = vmatprep.subr.bf16.mxu0 0
        %314 = vmatpush2.bf16.msra.mxu0 0
        %315 = vmatprep.subr.bf16.mxu0 0
        %316 = vmatpush2.bf16.msra.mxu0 0
        %317 = vmatprep.subr.bf16.mxu0 0
        %318 = vmatpush2.bf16.msra.mxu0 0
        %319 = vmatprep.subr.bf16.mxu0 0
        %320 = vmatpush2.bf16.msra.mxu0 0
        %321 = vmatprep.mubr.bf16.mxu0 0
        %322 = vmatmul.mubr.bf16.gmra.mxu0 %v280
        %v323 = vpop.f32.mrf.mxu0
        %v324 = vadd.f32 0.0, %v323
        %v325 = vpop.f32.mrf.mxu0
        %v326 = vpop.f32.mrf.mxu0
        %v327 = vadd.f32 0.0, %v326
        %v328 = vpop.f32.mrf.mxu0
        %329 = vmatprep.mubr.bf16.mxu0 0
        %330 = vmatmul.mubr.bf16.gmra.mxu0 %v283
        %v331 = vpop.f32.mrf.mxu0
        %v332 = vadd.f32 0.0, %v331
        %v333 = vpop.f32.mrf.mxu0
        %v334 = vpop.f32.mrf.mxu0
        %v335 = vpop.f32.mrf.mxu0
        %336 = vdwg.mxu0
        %v340 = vunpack.c.l.b16 %v223
        %v341 = vunpack.c.l.b16 %v224
        %v342 = vunpack.c.l.b16 %v225
        %v343 = vpack.c.b16 %v341, %v340
        %v344 = vpack.c.b16 %v342, %v342
        %v346 = vsel %vm278, %v220, 0
        %v348 = vsel %vm278, %v222, 0
        %v351 = vsel %vm285, %v344, 0
        %353 = vmatprep.subr.bf16.mxu0 0
        %354 = vmatpush1.bf16.msra.mxu0 0
        %355 = vmatprep.subr.bf16.mxu0 0
        %356 = vmatpush1.bf16.msra.mxu0 0
        %357 = vmatprep.subr.bf16.mxu0 0
        %358 = vmatpush1.bf16.msra.mxu0 0
        %359 = vmatprep.subr.bf16.mxu0 0
        %360 = vmatpush1.bf16.msra.mxu0 0
        %361 = vmatprep.subr.bf16.mxu0 0
        %362 = vmatpush1.bf16.msra.mxu0 0
        %363 = vmatprep.subr.bf16.mxu0 0
        %364 = vmatpush1.bf16.msra.mxu0 0
        %365 = vmatprep.subr.bf16.mxu0 0
        %366 = vmatpush1.bf16.msra.mxu0 %v351
        %367 = vmatprep.subr.bf16.mxu0 0
        %368 = vmatpush1.bf16.msra.mxu0 %v343
        %369 = vmatprep.subr.bf16.mxu0 0
        %370 = vmatpush2.bf16.msra.mxu0 0
        %371 = vmatprep.subr.bf16.mxu0 0
        %372 = vmatpush2.bf16.msra.mxu0 0
        %373 = vmatprep.subr.bf16.mxu0 0
        %374 = vmatpush2.bf16.msra.mxu0 0
        %375 = vmatprep.subr.bf16.mxu0 0
        %376 = vmatpush2.bf16.msra.mxu0 0
        %377 = vmatprep.subr.bf16.mxu0 0
        %378 = vmatpush2.bf16.msra.mxu0 0
        %379 = vmatprep.subr.bf16.mxu0 0
        %380 = vmatpush2.bf16.msra.mxu0 0
        %381 = vmatprep.subr.bf16.mxu0 0
        %382 = vmatpush2.bf16.msra.mxu0 0
        %383 = vmatprep.subr.bf16.mxu0 0
        %384 = vmatpush2.bf16.msra.mxu0 0
        %385 = vmatprep.mubr.bf16.mxu0 0
        %386 = vmatmul.mubr.bf16.gmra.mxu0 %v346
        %v387 = vpop.f32.mrf.mxu0
        %v388 = vadd.f32 %v324, %v387
        %v389 = vpop.f32.mrf.mxu0
        %v390 = vpop.f32.mrf.mxu0
        %v391 = vadd.f32 %v327, %v390
        %v392 = vpop.f32.mrf.mxu0
        %393 = vmatprep.mubr.bf16.mxu0 0
        %394 = vmatmul.mubr.bf16.gmra.mxu0 %v348
        %v395 = vpop.f32.mrf.mxu0
        %v396 = vadd.f32 %v332, %v395
        %v397 = vpop.f32.mrf.mxu0
        %v398 = vpop.f32.mrf.mxu0
        %v399 = vpop.f32.mrf.mxu0
        %400 = vdwg.mxu0
        %v402 = vunpack.c.l.b16 %v176
        %v403 = vpack.c.b16 %v402, %v227
        %v405 = vshrl.u32 %v241, 16
        %v407 = vshll.u32 %v241, 16
        %v409 = vrot.slane %v407, 1
        %v410 = vor.u32 %v405, %v409
        %v412 = vshll.u32 %v403, 16
        %v414 = vrot.slane %v412, 1
        %v415 = vsel %vm185, %v410, %v414
        %v416 = vshrl.u32 %v403, 16
        %v418 = vor.u32 %v416, %v414
        %419 = vrot.lane.b32.xlu0 %v415, 8
        %v420 = vpop.permute.xlu0 %419
        %421 = vrot.lane.b32.xlu0 %v418, 8
        %v422 = vpop.permute.xlu0 %421
        %v423 = vrot.slane %v241, 1
        %v424 = vrot.slane %v403, 1
        %v425 = vsel %vm205, %v423, %v424
        %426 = vrot.lane.b32.xlu0 %v425, 16
        %v427 = vpop.permute.xlu0 %426
        %428 = vrot.lane.b32.xlu0 %v424, 16
        %v429 = vpop.permute.xlu0 %428
        %v431 = vsel %vm213, %v241, %v420
        %v433 = vsel %vm213, %v403, %v422
        %v435 = vsel %vm218, %v431, %v427
        %v437 = vsel %vm218, %v433, %v429
        %s438 = scalar_lea.vmem %s1, 24
        %v439 = vld [vmem:[%s438] sm:$0xf]
        %v440 = vld [vmem:[%s438 + $0x4] sm:$0xf]
        %v441 = vld [vmem:[%s438 + $0x8] sm:$0xf]
        %vm444 = vcmask 1045504
        %v445 = vrot.slane %v435, 2
        %v446 = vrot.slane %v437, 2
        %v447 = vsel %vm444, %v445, %v446
        %v451 = vunpack.c.l.b16 %v439
        %v452 = vunpack.c.l.b16 %v440
        %v453 = vunpack.c.l.b16 %v441
        %v454 = vpack.c.b16 %v452, %v451
        %v455 = vpack.c.b16 %v453, %v453
        %v458 = vsel %vm278, %v447, 0
        %v461 = vsel %vm278, %v446, 0
        %v464 = vsel %vm285, %v455, 0
        %466 = vmatprep.subr.bf16.mxu0 0
        %467 = vmatpush1.bf16.msra.mxu0 0
        %468 = vmatprep.subr.bf16.mxu0 0
        %469 = vmatpush1.bf16.msra.mxu0 0
        %470 = vmatprep.subr.bf16.mxu0 0
        %471 = vmatpush1.bf16.msra.mxu0 0
        %472 = vmatprep.subr.bf16.mxu0 0
        %473 = vmatpush1.bf16.msra.mxu0 0
        %474 = vmatprep.subr.bf16.mxu0 0
        %475 = vmatpush1.bf16.msra.mxu0 0
        %476 = vmatprep.subr.bf16.mxu0 0
        %477 = vmatpush1.bf16.msra.mxu0 0
        %478 = vmatprep.subr.bf16.mxu0 0
        %479 = vmatpush1.bf16.msra.mxu0 %v464
        %480 = vmatprep.subr.bf16.mxu0 0
        %481 = vmatpush1.bf16.msra.mxu0 %v454
        %482 = vmatprep.subr.bf16.mxu0 0
        %483 = vmatpush2.bf16.msra.mxu0 0
        %484 = vmatprep.subr.bf16.mxu0 0
        %485 = vmatpush2.bf16.msra.mxu0 0
        %486 = vmatprep.subr.bf16.mxu0 0
        %487 = vmatpush2.bf16.msra.mxu0 0
        %488 = vmatprep.subr.bf16.mxu0 0
        %489 = vmatpush2.bf16.msra.mxu0 0
        %490 = vmatprep.subr.bf16.mxu0 0
        %491 = vmatpush2.bf16.msra.mxu0 0
        %492 = vmatprep.subr.bf16.mxu0 0
        %493 = vmatpush2.bf16.msra.mxu0 0
        %494 = vmatprep.subr.bf16.mxu0 0
        %495 = vmatpush2.bf16.msra.mxu0 0
        %496 = vmatprep.subr.bf16.mxu0 0
        %497 = vmatpush2.bf16.msra.mxu0 0
        %498 = vmatprep.mubr.bf16.mxu0 0
        %499 = vmatmul.mubr.bf16.gmra.mxu0 %v458
        %v500 = vpop.f32.mrf.mxu0
        %v501 = vadd.f32 0.0, %v500
        %v502 = vpop.f32.mrf.mxu0
        %v503 = vpop.f32.mrf.mxu0
        %v504 = vadd.f32 0.0, %v503
        %v505 = vpop.f32.mrf.mxu0
        %506 = vmatprep.mubr.bf16.mxu0 0
        %507 = vmatmul.mubr.bf16.gmra.mxu0 %v461
        %v508 = vpop.f32.mrf.mxu0
        %v509 = vadd.f32 0.0, %v508
        %v510 = vpop.f32.mrf.mxu0
        %v511 = vpop.f32.mrf.mxu0
        %v512 = vpop.f32.mrf.mxu0
        %513 = vdwg.mxu0
        %v514 = vadd.f32 %v388, %v501
        %v515 = vadd.f32 %v391, %v504
        %v516 = vadd.f32 %v396, %v509
        %v517 = vld [vmem:[%s2] sm:$0x1]
        %v519 = vlaneseq
        %v520 = vshrl.u32 %v519, 7
        %v521 = vsub.s32 0, %v520
        %v522 = vrot.slane %v517, %v521
        %v524 = vadd.f32 %v514, %v522
        %v525 = vadd.f32 %v515, %v522
        %v526 = vadd.f32 %v516, %v522
        %v527 = vmax.f32 %v524, 0.0
        %v528 = vmax.f32 %v525, 0.0
        %v529 = vmax.f32 %v526, 0.0
        %v530 = vpack.c.bf16 %v528, %v527
        %v531 = vpack.c.bf16 %v529, %v529
        %vm532 = vcmask 123904
        %533 = vst.msk [vmem:[%s164] sm:$0x3] %vm532, %v530
        %v535 = vunpack.c.l.b16 %v530
        %v536 = vunpack.c.h.b16 %v530
        %v537 = vpack.c.b16 %v535, %v535
        %v538 = vpack.c.b16 %v536, %v536
        %vm539 = vcmask 1046532
        %vm540 = vmor %vm243, %vm539
        %v541 = vrot.slane %v537, 5
        %v542 = vrot.slane %v541, 4
        %v543 = vrot.slane %v538, 5
        %v544 = vsel %vm540, %v542, %v543
        %vm546 = vcmask 125954
        %547 = vst.msk [vmem:[%s164] sm:$0xc] %vm546, %v544
        %v548 = vrot.slane %v538, 6
        %v549 = vrot.slane %v548, 4
        %551 = vst.msk [vmem:[%s164 + $0x4] sm:$0x3] %vm532, %v549
        %v553 = vunpack.c.l.b16 %v531
        %v554 = vpack.c.b16 %v553, %v553
        %v555 = vrot.slane %v554, 7
        %557 = vst.msk [vmem:[%s164 + $0x4] sm:$0xc] %vm546, %v555
        %s558 = sand.u32 %s93, 1
        %s559 = scalar_lea.sflag [#allocation3], %s558
        %s560 = sand.u32 %s93, 1
        %s561 = smul.addr %s560, 8
        %s562 = scalar_lea.vmem [#allocation2], %s561
        // Predicated region
        $region33: #{_conv_impl.1} parent=31 // pred_check
          %p563 = pneg %p103
        $region34: #{_conv_impl.1} parent=31 // pred_check_branch
          %565 = sbr.rel (%p563) target = $region36
        $region35: #{_conv_impl.1} parent=31 // pred_region
          %s567 = ssub.s32 128, 128
          %568 = vsyncadd %s559, %s567
          %s569 = smul.addr %s17, 2
          %s570 = smul.addr %s569, 64
          %s571 = scalar_lea.hbm %s3, %s570
          %s572 = sshll.u32 %s562, 4
          %s573 = int_to_ptr.vmem [resolvable:$true] %s572
          %578 = dma.vmem_to_hbm [thread:$0]  %s573, 128, %s571, %s559, 64, 64, 4
        $region36: #{_conv_impl.1} parent=31 // pred_fallthru
          _
      $region32: #{_conv_impl.1} parent=5 // pred_fallthru
        _
      %p579 = scmp.le.s32.totalorder 2, %s12
      // Predicated region
      $region37: #{_conv_impl.1} parent=5 // pred_check
        %p580 = pneg %p579
      $region38: #{_conv_impl.1} parent=5 // pred_check_branch
        %582 = sbr.rel (%p580) target = $region40
      $region39: #{_conv_impl.1} parent=5 // pred_region
        %s583 = ssub.s32 %s12, 2
        // Predicated region
        $region41: #{_conv_impl.1} parent=39 // pred_check
          %p584 = pneg %p109
        $region42: #{_conv_impl.1} parent=39 // pred_check_branch
          %586 = sbr.rel (%p584) target = $region44
        $region43: #{_conv_impl.1} parent=39 // pred_region
          %s587 = sand.u32 %s94, 1
          %s588 = scalar_lea.sflag [#allocation3], %s587
          %s589 = sand.u32 %s94, 1
          %s590 = smul.addr %s589, 8
          %s591 = scalar_lea.vmem [#allocation2], %s590
          %592 = dma.done %s588, 128
        $region44: #{_conv_impl.1} parent=39 // pred_fallthru
          _
      $region40: #{_conv_impl.1} parent=5 // pred_fallthru
        _
    $region6: #{_conv_impl.1} parent=1 // loop_footer
      %s16 = sadd.s32 1, %s12
    $region7: #{_conv_impl.1} parent=1 // loop_footer_branch
      %11 = sbr.rel target = $region3
    $region8: #{_conv_impl.1} parent=1 // loop_exit
      _
    %593 = vsyncpa [#allocation3], 1
    %s594 = scalar_lea.sflag [#allocation3], 1
    %595 = vsyncpa %s594, 1

// kernel: _conv_impl.1
$region0: #{_conv_impl.1}
  #allocation0 [shape = 'u32[]', space=smem, size = 0x4, offset = 0x4, fixed_abs, tag = 'smem constant byte address 0x4 - core index']
  #allocation1 [shape = 'u32[144,128]{1,0:T(1,128)}', space=vmem, size = 0x12000, scoped, tag = 'internal scratch']
  %s0 = inlined_call_operand.vmem [shape: bf16[80,8], index: 0, kind: input, shape index: {}]
  %s1 = inlined_call_operand.vmem [shape: bf16[3,24,16], index: 1, kind: input, shape index: {}]
  %s2 = inlined_call_operand.vmem [shape: f32[1,16], index: 2, kind: input, shape index: {}]
  %s3 = inlined_call_operand.hbm [shape: bf16[2,16,16], index: 3, kind: output, shape index: {}]
  %s4 = sld [smem:[#allocation0]]
  $region45: #{_conv_impl.1} parent=0
    _
  %s6 = ssub.s32 1, %s4
  %s7 = scalar_select 0, %s6, %s4
  $region1: #{_conv_impl.1} parent=0
    #allocation2 [shape = 'u8[8192]{0}', space=vmem, size = 0x2000, scoped, tag = 'output window, operand 0']
    #allocation3 [shape = 's32[2]{0}', space=sflag, size = 0x8, scoped, tag = 'scoped memory for _conv_impl.1']
    %8 = vsyncpa [#allocation3], 0
    %s9 = scalar_lea.sflag [#allocation3], 1
    %10 = vsyncpa %s9, 0
    loop: start=0, step=1, limit=4
    $region2: #{_conv_impl.1} parent=1 // loop_pre_header
      _
    $region3: #{_conv_impl.1} parent=1 // loop_header
      %s12 = sphi 0, %s16
      %p13 = scmp.ge.s32.totalorder %s12, 4
      %s22 = sphi 0, %s24
      %s25 = sphi 0, %s22
      %s26 = sphi 0, %s25
      %s42 = sphi 0, %s26
      %s46 = sphi 0, %s46
      %s48 = sphi 0, %s46
      %s49 = sphi 0, %s48
      %s63 = sphi 0, %s49
      %s67 = sphi 0, %s67
      %s69 = sphi 0, %s67
      %s70 = sphi 0, %s69
      %s84 = sphi 0, %s70
      %s90 = sphi 0, %s92
      %s93 = sphi 0, %s90
      %s94 = sphi 0, %s93
      %s110 = sphi 0, %s94
    $region4: #{_conv_impl.1} parent=1 // loop_header_branch
      %15 = sbr.rel (%p13) target = $region8
    $region5: #{_conv_impl.1} parent=1 // loop_body
      %s17 = ssub.s32 %s12, 1
      %s18 = ssub.s32 %s12, 2
      %s19 = sadd.s32 %s12, 1
      %s20 = ssub.s32 %s12, %s19
      %p21 = scmp.eq.s32.totalorder %s20, 0
      %s23 = sadd.s32 %s22, 1
      %s24 = scalar_select %p21, %s22, %s23
      %p27 = pneg %p21
      %p28 = scmp.eq.s32.totalorder %s12, 1
      %p29 = por %p27, %p28
      %p30 = scmp.ne.s32.totalorder %s22, %s25
      %p31 = scmp.eq.s32.totalorder %s12, 0
      %p32 = por %p30, %p31
      %p33 = scmp.ne.s32.totalorder %s22, %s25
      %p34 = scmp.eq.s32.totalorder %s17, 1
      %p35 = por %p33, %p34
      %p36 = scmp.ne.s32.totalorder %s25, %s26
      %p37 = scmp.eq.s32.totalorder %s17, 0
      %p38 = por %p36, %p37
      %p39 = scmp.ne.s32.totalorder %s25, %s26
      %p40 = scmp.eq.s32.totalorder %s18, 1
      %p41 = por %p39, %p40
      %p43 = scmp.ne.s32.totalorder %s26, %s42
      %p44 = scmp.eq.s32.totalorder %s18, 0
      %p45 = por %p43, %p44
      %s47 = sadd.s32 %s46, 1
      %p50 = scmp.eq.s32.totalorder %s12, 1
      %p51 = scmp.ne.s32.totalorder %s46, %s48
      %p52 = scmp.eq.s32.totalorder %s12, 0
      %p53 = por %p51, %p52
      %p54 = scmp.ne.s32.totalorder %s46, %s48
      %p55 = scmp.eq.s32.totalorder %s17, 1
      %p56 = por %p54, %p55
      %p57 = scmp.ne.s32.totalorder %s48, %s49
      %p58 = scmp.eq.s32.totalorder %s17, 0
      %p59 = por %p57, %p58
      %p60 = scmp.ne.s32.totalorder %s48, %s49
      %p61 = scmp.eq.s32.totalorder %s18, 1
      %p62 = por %p60, %p61
      %p64 = scmp.ne.s32.totalorder %s49, %s63
      %p65 = scmp.eq.s32.totalorder %s18, 0
      %p66 = por %p64, %p65
      %s68 = sadd.s32 %s67, 1
      %p71 = scmp.eq.s32.totalorder %s12, 1
      %p72 = scmp.ne.s32.totalorder %s67, %s69
      %p73 = scmp.eq.s32.totalorder %s12, 0
      %p74 = por %p72, %p73
      %p75 = scmp.ne.s32.totalorder %s67, %s69
      %p76 = scmp.eq.s32.totalorder %s17, 1
      %p77 = por %p75, %p76
      %p78 = scmp.ne.s32.totalorder %s69, %s70
      %p79 = scmp.eq.s32.totalorder %s17, 0
      %p80 = por %p78, %p79
      %p81 = scmp.ne.s32.totalorder %s69, %s70
      %p82 = scmp.eq.s32.totalorder %s18, 1
      %p83 = por %p81, %p82
      %p85 = scmp.ne.s32.totalorder %s70, %s84
      %p86 = scmp.eq.s32.totalorder %s18, 0
      %p87 = por %p85, %p86
      %s88 = ssub.s32 %s12, %s19
      %p89 = scmp.eq.s32.totalorder %s88, 0
      %s91 = sadd.s32 %s90, 1
      %s92 = scalar_select %p89, %s90, %s91
      %p95 = pneg %p89
      %p96 = scmp.eq.s32.totalorder %s12, 1
      %p97 = por %p95, %p96
      %p98 = scmp.ne.s32.totalorder %s90, %s93
      %p99 = scmp.eq.s32.totalorder %s12, 0
      %p100 = por %p98, %p99
      %p101 = scmp.ne.s32.totalorder %s90, %s93
      %p102 = scmp.eq.s32.totalorder %s17, 1
      %p103 = por %p101, %p102
      %p104 = scmp.ne.s32.totalorder %s93, %s94
      %p105 = scmp.eq.s32.totalorder %s17, 0
      %p106 = por %p104, %p105
      %p107 = scmp.ne.s32.totalorder %s93, %s94
      %p108 = scmp.eq.s32.totalorder %s18, 1
      %p109 = por %p107, %p108
      %p111 = scmp.ne.s32.totalorder %s94, %s110
      %p112 = scmp.eq.s32.totalorder %s18, 0
      %p113 = por %p111, %p112
      %p114 = scmp.le.s32.totalorder 1, %s12
      %p115 = scmp.lt.s32.totalorder %s12, 3
      %p116 = pnand %p114, %p115
      %p117 = pneg %p116
      // Predicated region
      $region9: #{_conv_impl.1} parent=5 // pred_check
        _
      $region10: #{_conv_impl.1} parent=5 // pred_check_branch
        %119 = sbr.rel (%p116) target = $region12
      $region11: #{_conv_impl.1} parent=5 // pred_region
        %s120 = ssub.s32 %s12, 1
        // Predicated region
        $region13: #{_conv_impl.1} parent=11 // pred_check
          %p121 = pneg %p59
        $region14: #{_conv_impl.1} parent=11 // pred_check_branch
          %123 = sbr.rel (%p121) target = $region16
        $region15: #{_conv_impl.1} parent=11 // pred_region
          _
        $region16: #{_conv_impl.1} parent=11 // pred_fallthru
          _
        // Predicated region
        $region17: #{_conv_impl.1} parent=11 // pred_check
          %p124 = pneg %p80
        $region18: #{_conv_impl.1} parent=11 // pred_check_branch
          %126 = sbr.rel (%p124) target = $region20
        $region19: #{_conv_impl.1} parent=11 // pred_region
          _
        $region20: #{_conv_impl.1} parent=11 // pred_fallthru
          _
      $region12: #{_conv_impl.1} parent=5 // pred_fallthru
        _
      %p127 = scmp.lt.s32.totalorder %s12, 2
      // Predicated region
      $region21: #{_conv_impl.1} parent=5 // pred_check
        %p128 = pneg %p127
      $region22: #{_conv_impl.1} parent=5 // pred_check_branch
        %130 = sbr.rel (%p128) target = $region24
      $region23: #{_conv_impl.1} parent=5 // pred_region
        // Predicated region
        $region25: #{_conv_impl.1} parent=23 // pred_check
          %p131 = pneg %p32
        $region26: #{_conv_impl.1} parent=23 // pred_check_branch
          %133 = sbr.rel (%p131) target = $region28
        $region27: #{_conv_impl.1} parent=23 // pred_region
          %s134 = smul.u32 5, %s12
          %p135 = scmp.lt.s32.totalorder %s134, 9
          %s136 = scalar_select %p135, %s134, 9
          %s137 = smul.addr %s136, 4
          %s138 = scalar_lea.vmem %s0, %s137
          %s139 = smul.u32 5, %s12
        $region28: #{_conv_impl.1} parent=23 // pred_fallthru
          _
      $region24: #{_conv_impl.1} parent=5 // pred_fallthru
        _
      %p140 = scmp.le.s32.totalorder 1, %s12
      %p141 = scmp.lt.s32.totalorder %s12, 3
      %p142 = pnand %p140, %p141
      %p143 = pneg %p142
      // Predicated region
      $region29: #{_conv_impl.1} parent=5 // pred_check
        _
      $region30: #{_conv_impl.1} parent=5 // pred_check_branch
        %145 = sbr.rel (%p142) target = $region32
      $region31: #{_conv_impl.1} parent=5 // pred_region
        %s146 = ssub.s32 %s12, 1
        %s147 = smul.u32 5, %s17
        %p148 = scmp.lt.s32.totalorder %s147, 9
        %s149 = scalar_select %p148, %s147, 9
        %s150 = smul.addr %s149, 4
        %s151 = scalar_lea.vmem %s0, %s150
        %p152 = pneg %p38
        %p153 = pneg %p35
        %p154 = pneg %p59
        %p155 = pneg %p56
        %p156 = pneg %p80
        %p157 = pneg %p77
        %p158 = pneg %p106
        %p159 = pneg %p103
        %s160 = sand.u32 %s93, 1
        %s161 = scalar_lea.sflag [#allocation3], %s160
        %s162 = sand.u32 %s93, 1
        %s163 = smul.addr %s162, 8
        %s164 = scalar_lea.vmem [#allocation2], %s163
        %s165 = smul.u32 5, %s17
        %p166 = scmp.lt.s32.totalorder %s165, 9
        %s167 = scalar_select %p166, %s165, 9
        %s168 = smul.addr %s167, 4
        %s169 = scalar_lea.vmem %s0, %s168
        %s170 = smul.u32 5, %s17
        %v172 = vld [vmem:[%s169] sm:$0xf]
        %v173 = vld [vmem:[%s169 + $0x4] sm:$0xf]
        %v174 = vld [vmem:[%s169 + $0x8] sm:$0xf]
        %v175 = vld [vmem:[%s169 + $0xc] sm:$0xf]
        %v176 = vld [vmem:[%s169 + $0x10] sm:$0xf]
        %v177 = vld [vmem:[%s1] sm:$0xf]
        %v178 = vld [vmem:[%s1 + $0x4] sm:$0xf]
        %v182 = vunpack.c.l.b16 %v172
        %v183 = vunpack.c.l.b16 %v173
        %v184 = vunpack.c.l.b16 %v174
        %v185 = vpack.c.b16 %v183, %v182
        %v186 = vpack.c.b16 %v184, %v184
        %vm187 = vsmask.f32 7424
        %v189 = vshrl.u32 %v185, 16
        %v191 = vshll.u32 %v185, 16
        %v193 = vrot.slane %v191, 1
        %v194 = vor.u32 %v189, %v193
        %v196 = vshll.u32 %v186, 16
        %v198 = vrot.slane %v196, 1
        %v199 = vsel %vm187, %v194, %v198
        %v200 = vshrl.u32 %v186, 16
        %v202 = vor.u32 %v200, %v198
        %vm203 = vcmask 64512
        %v205 = vsel %vm203, %v199, 0
        %v208 = vsel %vm203, %v202, 0
        %vm210 = vcmask 1043456
        %v212 = vsel %vm210, %v178, 0
        %214 = vmatprep.subr.bf16.mxu0 0
        %215 = vmatpush1.bf16.msra.mxu0 0
        %216 = vmatprep.subr.bf16.mxu0 0
        %217 = vmatpush1.bf16.msra.mxu0 0
        %218 = vmatprep.subr.bf16.mxu0 0
        %219 = vmatpush1.bf16.msra.mxu0 0
        %220 = vmatprep.subr.bf16.mxu0 0
        %221 = vmatpush1.bf16.msra.mxu0 0
        %222 = vmatprep.subr.bf16.mxu0 0
        %223 = vmatpush1.bf16.msra.mxu0 0
        %224 = vmatprep.subr.bf16.mxu0 0
        %225 = vmatpush1.bf16.msra.mxu0 0
        %226 = vmatprep.subr.bf16.mxu0 0
        %227 = vmatpush1.bf16.msra.mxu0 0
        %228 = vmatprep.subr.bf16.mxu0 0
        %229 = vmatpush1.bf16.msra.mxu0 %v212
        %230 = vmatprep.subr.bf16.mxu0 0
        %231 = vmatpush2.bf16.msra.mxu0 0
        %232 = vmatprep.subr.bf16.mxu0 0
        %233 = vmatpush2.bf16.msra.mxu0 0
        %234 = vmatprep.subr.bf16.mxu0 0
        %235 = vmatpush2.bf16.msra.mxu0 0
        %236 = vmatprep.subr.bf16.mxu0 0
        %237 = vmatpush2.bf16.msra.mxu0 0
        %238 = vmatprep.subr.bf16.mxu0 0
        %239 = vmatpush2.bf16.msra.mxu0 0
        %240 = vmatprep.subr.bf16.mxu0 0
        %241 = vmatpush2.bf16.msra.mxu0 0
        %242 = vmatprep.subr.bf16.mxu0 0
        %243 = vmatpush2.bf16.msra.mxu0 0
        %244 = vmatprep.subr.bf16.mxu0 0
        %245 = vmatpush2.bf16.msra.mxu0 0
        %246 = vmatprep.mubr.bf16.mxu0 0
        %247 = vmatmul.mubr.bf16.gmra.mxu0 %v205
        %v248 = vpop.f32.mrf.mxu0
        %v249 = vadd.f32 0.0, %v248
        %v250 = vpop.f32.mrf.mxu0
        %v251 = vpop.f32.mrf.mxu0
        %v252 = vadd.f32 0.0, %v251
        %v253 = vpop.f32.mrf.mxu0
        %254 = vmatprep.mubr.bf16.mxu0 0
        %255 = vmatmul.mubr.bf16.gmra.mxu0 %v208
        %v256 = vpop.f32.mrf.mxu0
        %v257 = vadd.f32 0.0, %v256
        %v258 = vpop.f32.mrf.mxu0
        %v259 = vpop.f32.mrf.mxu0
        %v260 = vpop.f32.mrf.mxu0
        %261 = vdwg.mxu0
        %v262 = vsel %vm203, %v185, 0
        %v264 = vsel %vm203, %v186, 0
        %v267 = vsel %vm210, %v177, 0
        %269 = vmatprep.subr.bf16.mxu0 0
        %270 = vmatpush1.bf16.msra.mxu0 0
        %271 = vmatprep.subr.bf16.mxu0 0
        %272 = vmatpush1.bf16.msra.mxu0 0
        %273 = vmatprep.subr.bf16.mxu0 0
        %274 = vmatpush1.bf16.msra.mxu0 0
        %275 = vmatprep.subr.bf16.mxu0 0
        %276 = vmatpush1.bf16.msra.mxu0 0
        %277 = vmatprep.subr.bf16.mxu0 0
        %278 = vmatpush1.bf16.msra.mxu0 0
        %279 = vmatprep.subr.bf16.mxu0 0
        %280 = vmatpush1.bf16.msra.mxu0 0
        %281 = vmatprep.subr.bf16.mxu0 0
        %282 = vmatpush1.bf16.msra.mxu0 0
        %283 = vmatprep.subr.bf16.mxu0 0
        %284 = vmatpush1.bf16.msra.mxu0 %v267
        %285 = vmatprep.subr.bf16.mxu0 0
        %286 = vmatpush2.bf16.msra.mxu0 0
        %287 = vmatprep.subr.bf16.mxu0 0
        %288 = vmatpush2.bf16.msra.mxu0 0
        %289 = vmatprep.subr.bf16.mxu0 0
        %290 = vmatpush2.bf16.msra.mxu0 0
        %291 = vmatprep.subr.bf16.mxu0 0
        %292 = vmatpush2.bf16.msra.mxu0 0
        %293 = vmatprep.subr.bf16.mxu0 0
        %294 = vmatpush2.bf16.msra.mxu0 0
        %295 = vmatprep.subr.bf16.mxu0 0
        %296 = vmatpush2.bf16.msra.mxu0 0
        %297 = vmatprep.subr.bf16.mxu0 0
        %298 = vmatpush2.bf16.msra.mxu0 0
        %299 = vmatprep.subr.bf16.mxu0 0
        %300 = vmatpush2.bf16.msra.mxu0 0
        %301 = vmatprep.mubr.bf16.mxu0 0
        %302 = vmatmul.mubr.bf16.gmra.mxu0 %v262
        %v303 = vpop.f32.mrf.mxu0
        %v304 = vadd.f32 %v249, %v303
        %v305 = vpop.f32.mrf.mxu0
        %v306 = vpop.f32.mrf.mxu0
        %v307 = vadd.f32 %v252, %v306
        %v308 = vpop.f32.mrf.mxu0
        %309 = vmatprep.mubr.bf16.mxu0 0
        %310 = vmatmul.mubr.bf16.gmra.mxu0 %v264
        %v311 = vpop.f32.mrf.mxu0
        %v312 = vadd.f32 %v257, %v311
        %v313 = vpop.f32.mrf.mxu0
        %v314 = vpop.f32.mrf.mxu0
        %v315 = vpop.f32.mrf.mxu0
        %316 = vdwg.mxu0
        %v317 = vld [vmem:[%s1 + $0x8] sm:$0xf]
        %vm318 = vcmask 1046528
        %v319 = vrot.slane %v185, 1
        %v320 = vrot.slane %v186, 1
        %v321 = vsel %vm318, %v319, %v320
        %v323 = vsel %vm203, %v321, 0
        %v326 = vsel %vm203, %v320, 0
        %v329 = vsel %vm210, %v317, 0
        %331 = vmatprep.subr.bf16.mxu0 0
        %332 = vmatpush1.bf16.msra.mxu0 0
        %333 = vmatprep.subr.bf16.mxu0 0
        %334 = vmatpush1.bf16.msra.mxu0 0
        %335 = vmatprep.subr.bf16.mxu0 0
        %336 = vmatpush1.bf16.msra.mxu0 0
        %337 = vmatprep.subr.bf16.mxu0 0
        %338 = vmatpush1.bf16.msra.mxu0 0
        %339 = vmatprep.subr.bf16.mxu0 0
        %340 = vmatpush1.bf16.msra.mxu0 0
        %341 = vmatprep.subr.bf16.mxu0 0
        %342 = vmatpush1.bf16.msra.mxu0 0
        %343 = vmatprep.subr.bf16.mxu0 0
        %344 = vmatpush1.bf16.msra.mxu0 0
        %345 = vmatprep.subr.bf16.mxu0 0
        %346 = vmatpush1.bf16.msra.mxu0 %v329
        %347 = vmatprep.subr.bf16.mxu0 0
        %348 = vmatpush2.bf16.msra.mxu0 0
        %349 = vmatprep.subr.bf16.mxu0 0
        %350 = vmatpush2.bf16.msra.mxu0 0
        %351 = vmatprep.subr.bf16.mxu0 0
        %352 = vmatpush2.bf16.msra.mxu0 0
        %353 = vmatprep.subr.bf16.mxu0 0
        %354 = vmatpush2.bf16.msra.mxu0 0
        %355 = vmatprep.subr.bf16.mxu0 0
        %356 = vmatpush2.bf16.msra.mxu0 0
        %357 = vmatprep.subr.bf16.mxu0 0
        %358 = vmatpush2.bf16.msra.mxu0 0
        %359 = vmatprep.subr.bf16.mxu0 0
        %360 = vmatpush2.bf16.msra.mxu0 0
        %361 = vmatprep.subr.bf16.mxu0 0
        %362 = vmatpush2.bf16.msra.mxu0 0
        %363 = vmatprep.mubr.bf16.mxu0 0
        %364 = vmatmul.mubr.bf16.gmra.mxu0 %v323
        %v365 = vpop.f32.mrf.mxu0
        %v366 = vadd.f32 0.0, %v365
        %v367 = vpop.f32.mrf.mxu0
        %v368 = vpop.f32.mrf.mxu0
        %v369 = vadd.f32 0.0, %v368
        %v370 = vpop.f32.mrf.mxu0
        %371 = vmatprep.mubr.bf16.mxu0 0
        %372 = vmatmul.mubr.bf16.gmra.mxu0 %v326
        %v373 = vpop.f32.mrf.mxu0
        %v374 = vadd.f32 0.0, %v373
        %v375 = vpop.f32.mrf.mxu0
        %v376 = vpop.f32.mrf.mxu0
        %v377 = vpop.f32.mrf.mxu0
        %378 = vdwg.mxu0
        %v379 = vadd.f32 %v304, %v366
        %v380 = vadd.f32 %v307, %v369
        %v381 = vadd.f32 %v312, %v374
        %s382 = scalar_lea.vmem %s1, 12
        %v383 = vld [vmem:[%s382] sm:$0xf]
        %v385 = vunpack.c.l.b16 %v175
        %v386 = vpack.c.b16 %v385, %v184
        %vm387 = vcmask 1044480
        %v388 = vrot.slane %v185, 3
        %v389 = vrot.slane %v386, 3
        %v390 = vsel %vm387, %v388, %v389
        %v392 = vsel %vm203, %v390, 0
        %v395 = vsel %vm203, %v389, 0
        %v398 = vsel %vm210, %v383, 0
        %400 = vmatprep.subr.bf16.mxu0 0
        %401 = vmatpush1.bf16.msra.mxu0 0
        %402 = vmatprep.subr.bf16.mxu0 0
        %403 = vmatpush1.bf16.msra.mxu0 0
        %404 = vmatprep.subr.bf16.mxu0 0
        %405 = vmatpush1.bf16.msra.mxu0 0
        %406 = vmatprep.subr.bf16.mxu0 0
        %407 = vmatpush1.bf16.msra.mxu0 0
        %408 = vmatprep.subr.bf16.mxu0 0
        %409 = vmatpush1.bf16.msra.mxu0 0
        %410 = vmatprep.subr.bf16.mxu0 0
        %411 = vmatpush1.bf16.msra.mxu0 0
        %412 = vmatprep.subr.bf16.mxu0 0
        %413 = vmatpush1.bf16.msra.mxu0 0
        %414 = vmatprep.subr.bf16.mxu0 0
        %415 = vmatpush1.bf16.msra.mxu0 %v398
        %416 = vmatprep.subr.bf16.mxu0 0
        %417 = vmatpush2.bf16.msra.mxu0 0
        %418 = vmatprep.subr.bf16.mxu0 0
        %419 = vmatpush2.bf16.msra.mxu0 0
        %420 = vmatprep.subr.bf16.mxu0 0
        %421 = vmatpush2.bf16.msra.mxu0 0
        %422 = vmatprep.subr.bf16.mxu0 0
        %423 = vmatpush2.bf16.msra.mxu0 0
        %424 = vmatprep.subr.bf16.mxu0 0
        %425 = vmatpush2.bf16.msra.mxu0 0
        %426 = vmatprep.subr.bf16.mxu0 0
        %427 = vmatpush2.bf16.msra.mxu0 0
        %428 = vmatprep.subr.bf16.mxu0 0
        %429 = vmatpush2.bf16.msra.mxu0 0
        %430 = vmatprep.subr.bf16.mxu0 0
        %431 = vmatpush2.bf16.msra.mxu0 0
        %432 = vmatprep.mubr.bf16.mxu0 0
        %433 = vmatmul.mubr.bf16.gmra.mxu0 %v392
        %v434 = vpop.f32.mrf.mxu0
        %v435 = vadd.f32 0.0, %v434
        %v436 = vpop.f32.mrf.mxu0
        %v437 = vpop.f32.mrf.mxu0
        %v438 = vadd.f32 0.0, %v437
        %v439 = vpop.f32.mrf.mxu0
        %440 = vmatprep.mubr.bf16.mxu0 0
        %441 = vmatmul.mubr.bf16.gmra.mxu0 %v395
        %v442 = vpop.f32.mrf.mxu0
        %v443 = vadd.f32 0.0, %v442
        %v444 = vpop.f32.mrf.mxu0
        %v445 = vpop.f32.mrf.mxu0
        %v446 = vpop.f32.mrf.mxu0
        %447 = vdwg.mxu0
        %v448 = vadd.f32 %v379, %v435
        %v449 = vadd.f32 %v380, %v438
        %v450 = vadd.f32 %v381, %v443
        %v451 = vld [vmem:[%s382 + $0x4] sm:$0xf]
        %vm452 = vsmask.f32 4352
        %v453 = vrot.slane %v189, 3
        %v454 = vrot.slane %v191, 4
        %v455 = vor.u32 %v453, %v454
        %v457 = vshrl.u32 %v386, 16
        %v459 = vrot.slane %v457, 3
        %v460 = vshll.u32 %v386, 16
        %v462 = vrot.slane %v460, 4
        %v463 = vor.u32 %v459, %v462
        %v464 = vsel %vm452, %v455, %v463
        %v466 = vsel %vm203, %v464, 0
        %v469 = vsel %vm203, %v463, 0
        %v472 = vsel %vm210, %v451, 0
        %474 = vmatprep.subr.bf16.mxu0 0
        %475 = vmatpush1.bf16.msra.mxu0 0
        %476 = vmatprep.subr.bf16.mxu0 0
        %477 = vmatpush1.bf16.msra.mxu0 0
        %478 = vmatprep.subr.bf16.mxu0 0
        %479 = vmatpush1.bf16.msra.mxu0 0
        %480 = vmatprep.subr.bf16.mxu0 0
        %481 = vmatpush1.bf16.msra.mxu0 0
        %482 = vmatprep.subr.bf16.mxu0 0
        %483 = vmatpush1.bf16.msra.mxu0 0
        %484 = vmatprep.subr.bf16.mxu0 0
        %485 = vmatpush1.bf16.msra.mxu0 0
        %486 = vmatprep.subr.bf16.mxu0 0
        %487 = vmatpush1.bf16.msra.mxu0 0
        %488 = vmatprep.subr.bf16.mxu0 0
        %489 = vmatpush1.bf16.msra.mxu0 %v472
        %490 = vmatprep.subr.bf16.mxu0 0
        %491 = vmatpush2.bf16.msra.mxu0 0
        %492 = vmatprep.subr.bf16.mxu0 0
        %493 = vmatpush2.bf16.msra.mxu0 0
        %494 = vmatprep.subr.bf16.mxu0 0
        %495 = vmatpush2.bf16.msra.mxu0 0
        %496 = vmatprep.subr.bf16.mxu0 0
        %497 = vmatpush2.bf16.msra.mxu0 0
        %498 = vmatprep.subr.bf16.mxu0 0
        %499 = vmatpush2.bf16.msra.mxu0 0
        %500 = vmatprep.subr.bf16.mxu0 0
        %501 = vmatpush2.bf16.msra.mxu0 0
        %502 = vmatprep.subr.bf16.mxu0 0
        %503 = vmatpush2.bf16.msra.mxu0 0
        %504 = vmatprep.subr.bf16.mxu0 0
        %505 = vmatpush2.bf16.msra.mxu0 0
        %506 = vmatprep.mubr.bf16.mxu0 0
        %507 = vmatmul.mubr.bf16.gmra.mxu0 %v466
        %v508 = vpop.f32.mrf.mxu0
        %v509 = vadd.f32 0.0, %v508
        %v510 = vpop.f32.mrf.mxu0
        %v511 = vpop.f32.mrf.mxu0
        %v512 = vadd.f32 0.0, %v511
        %v513 = vpop.f32.mrf.mxu0
        %514 = vmatprep.mubr.bf16.mxu0 0
        %515 = vmatmul.mubr.bf16.gmra.mxu0 %v469
        %v516 = vpop.f32.mrf.mxu0
        %v517 = vadd.f32 0.0, %v516
        %v518 = vpop.f32.mrf.mxu0
        %v519 = vpop.f32.mrf.mxu0
        %v520 = vpop.f32.mrf.mxu0
        %521 = vdwg.mxu0
        %v522 = vadd.f32 %v448, %v509
        %v523 = vadd.f32 %v449, %v512
        %v524 = vadd.f32 %v450, %v517
        %v525 = vld [vmem:[%s382 + $0x8] sm:$0xf]
        %v526 = vpack.c.b16 %v184, %v183
        %v527 = vpack.c.b16 %v385, %v385
        %v529 = vsel %vm203, %v526, 0
        %v532 = vsel %vm203, %v527, 0
        %v535 = vsel %vm210, %v525, 0
        %537 = vmatprep.subr.bf16.mxu0 0
        %538 = vmatpush1.bf16.msra.mxu0 0
        %539 = vmatprep.subr.bf16.mxu0 0
        %540 = vmatpush1.bf16.msra.mxu0 0
        %541 = vmatprep.subr.bf16.mxu0 0
        %542 = vmatpush1.bf16.msra.mxu0 0
        %543 = vmatprep.subr.bf16.mxu0 0
        %544 = vmatpush1.bf16.msra.mxu0 0
        %545 = vmatprep.subr.bf16.mxu0 0
        %546 = vmatpush1.bf16.msra.mxu0 0
        %547 = vmatprep.subr.bf16.mxu0 0
        %548 = vmatpush1.bf16.msra.mxu0 0
        %549 = vmatprep.subr.bf16.mxu0 0
        %550 = vmatpush1.bf16.msra.mxu0 0
        %551 = vmatprep.subr.bf16.mxu0 0
        %552 = vmatpush1.bf16.msra.mxu0 %v535
        %553 = vmatprep.subr.bf16.mxu0 0
        %554 = vmatpush2.bf16.msra.mxu0 0
        %555 = vmatprep.subr.bf16.mxu0 0
        %556 = vmatpush2.bf16.msra.mxu0 0
        %557 = vmatprep.subr.bf16.mxu0 0
        %558 = vmatpush2.bf16.msra.mxu0 0
        %559 = vmatprep.subr.bf16.mxu0 0
        %560 = vmatpush2.bf16.msra.mxu0 0
        %561 = vmatprep.subr.bf16.mxu0 0
        %562 = vmatpush2.bf16.msra.mxu0 0
        %563 = vmatprep.subr.bf16.mxu0 0
        %564 = vmatpush2.bf16.msra.mxu0 0
        %565 = vmatprep.subr.bf16.mxu0 0
        %566 = vmatpush2.bf16.msra.mxu0 0
        %567 = vmatprep.subr.bf16.mxu0 0
        %568 = vmatpush2.bf16.msra.mxu0 0
        %569 = vmatprep.mubr.bf16.mxu0 0
        %570 = vmatmul.mubr.bf16.gmra.mxu0 %v529
        %v571 = vpop.f32.mrf.mxu0
        %v572 = vadd.f32 0.0, %v571
        %v573 = vpop.f32.mrf.mxu0
        %v574 = vpop.f32.mrf.mxu0
        %v575 = vadd.f32 0.0, %v574
        %v576 = vpop.f32.mrf.mxu0
        %577 = vmatprep.mubr.bf16.mxu0 0
        %578 = vmatmul.mubr.bf16.gmra.mxu0 %v532
        %v579 = vpop.f32.mrf.mxu0
        %v580 = vadd.f32 0.0, %v579
        %v581 = vpop.f32.mrf.mxu0
        %v582 = vpop.f32.mrf.mxu0
        %v583 = vpop.f32.mrf.mxu0
        %584 = vdwg.mxu0
        %v585 = vadd.f32 %v522, %v572
        %v586 = vadd.f32 %v523, %v575
        %v587 = vadd.f32 %v524, %v580
        %s588 = scalar_lea.vmem %s1, 24
        %v589 = vld [vmem:[%s588] sm:$0xf]
        %v591 = vunpack.c.l.b16 %v176
        %v592 = vpack.c.b16 %v591, %v385
        %vm593 = vcmask 1045504
        %v594 = vrot.slane %v526, 2
        %v595 = vrot.slane %v592, 2
        %v596 = vsel %vm593, %v594, %v595
        %v598 = vsel %vm203, %v596, 0
        %v601 = vsel %vm203, %v595, 0
        %v604 = vsel %vm210, %v589, 0
        %606 = vmatprep.subr.bf16.mxu0 0
        %607 = vmatpush1.bf16.msra.mxu0 0
        %608 = vmatprep.subr.bf16.mxu0 0
        %609 = vmatpush1.bf16.msra.mxu0 0
        %610 = vmatprep.subr.bf16.mxu0 0
        %611 = vmatpush1.bf16.msra.mxu0 0
        %612 = vmatprep.subr.bf16.mxu0 0
        %613 = vmatpush1.bf16.msra.mxu0 0
        %614 = vmatprep.subr.bf16.mxu0 0
        %615 = vmatpush1.bf16.msra.mxu0 0
        %616 = vmatprep.subr.bf16.mxu0 0
        %617 = vmatpush1.bf16.msra.mxu0 0
        %618 = vmatprep.subr.bf16.mxu0 0
        %619 = vmatpush1.bf16.msra.mxu0 0
        %620 = vmatprep.subr.bf16.mxu0 0
        %621 = vmatpush1.bf16.msra.mxu0 %v604
        %622 = vmatprep.subr.bf16.mxu0 0
        %623 = vmatpush2.bf16.msra.mxu0 0
        %624 = vmatprep.subr.bf16.mxu0 0
        %625 = vmatpush2.bf16.msra.mxu0 0
        %626 = vmatprep.subr.bf16.mxu0 0
        %627 = vmatpush2.bf16.msra.mxu0 0
        %628 = vmatprep.subr.bf16.mxu0 0
        %629 = vmatpush2.bf16.msra.mxu0 0
        %630 = vmatprep.subr.bf16.mxu0 0
        %631 = vmatpush2.bf16.msra.mxu0 0
        %632 = vmatprep.subr.bf16.mxu0 0
        %633 = vmatpush2.bf16.msra.mxu0 0
        %634 = vmatprep.subr.bf16.mxu0 0
        %635 = vmatpush2.bf16.msra.mxu0 0
        %636 = vmatprep.subr.bf16.mxu0 0
        %637 = vmatpush2.bf16.msra.mxu0 0
        %638 = vmatprep.mubr.bf16.mxu0 0
        %639 = vmatmul.mubr.bf16.gmra.mxu0 %v598
        %v640 = vpop.f32.mrf.mxu0
        %v641 = vadd.f32 0.0, %v640
        %v642 = vpop.f32.mrf.mxu0
        %v643 = vpop.f32.mrf.mxu0
        %v644 = vadd.f32 0.0, %v643
        %v645 = vpop.f32.mrf.mxu0
        %646 = vmatprep.mubr.bf16.mxu0 0
        %647 = vmatmul.mubr.bf16.gmra.mxu0 %v601
        %v648 = vpop.f32.mrf.mxu0
        %v649 = vadd.f32 0.0, %v648
        %v650 = vpop.f32.mrf.mxu0
        %v651 = vpop.f32.mrf.mxu0
        %v652 = vpop.f32.mrf.mxu0
        %653 = vdwg.mxu0
        %v654 = vadd.f32 %v585, %v641
        %v655 = vadd.f32 %v586, %v644
        %v656 = vadd.f32 %v587, %v649
        %v657 = vld [vmem:[%s588 + $0x4] sm:$0xf]
        %vm658 = vsmask.f32 5376
        %v659 = vshrl.u32 %v526, 16
        %v661 = vrot.slane %v659, 2
        %v662 = vshll.u32 %v526, 16
        %v664 = vrot.slane %v662, 3
        %v665 = vor.u32 %v661, %v664
        %v667 = vshrl.u32 %v592, 16
        %v669 = vrot.slane %v667, 2
        %v670 = vshll.u32 %v592, 16
        %v672 = vrot.slane %v670, 3
        %v673 = vor.u32 %v669, %v672
        %v674 = vsel %vm658, %v665, %v673
        %v676 = vsel %vm203, %v674, 0
        %v679 = vsel %vm203, %v673, 0
        %v682 = vsel %vm210, %v657, 0
        %684 = vmatprep.subr.bf16.mxu0 0
        %685 = vmatpush1.bf16.msra.mxu0 0
        %686 = vmatprep.subr.bf16.mxu0 0
        %687 = vmatpush1.bf16.msra.mxu0 0
        %688 = vmatprep.subr.bf16.mxu0 0
        %689 = vmatpush1.bf16.msra.mxu0 0
        %690 = vmatprep.subr.bf16.mxu0 0
        %691 = vmatpush1.bf16.msra.mxu0 0
        %692 = vmatprep.subr.bf16.mxu0 0
        %693 = vmatpush1.bf16.msra.mxu0 0
        %694 = vmatprep.subr.bf16.mxu0 0
        %695 = vmatpush1.bf16.msra.mxu0 0
        %696 = vmatprep.subr.bf16.mxu0 0
        %697 = vmatpush1.bf16.msra.mxu0 0
        %698 = vmatprep.subr.bf16.mxu0 0
        %699 = vmatpush1.bf16.msra.mxu0 %v682
        %700 = vmatprep.subr.bf16.mxu0 0
        %701 = vmatpush2.bf16.msra.mxu0 0
        %702 = vmatprep.subr.bf16.mxu0 0
        %703 = vmatpush2.bf16.msra.mxu0 0
        %704 = vmatprep.subr.bf16.mxu0 0
        %705 = vmatpush2.bf16.msra.mxu0 0
        %706 = vmatprep.subr.bf16.mxu0 0
        %707 = vmatpush2.bf16.msra.mxu0 0
        %708 = vmatprep.subr.bf16.mxu0 0
        %709 = vmatpush2.bf16.msra.mxu0 0
        %710 = vmatprep.subr.bf16.mxu0 0
        %711 = vmatpush2.bf16.msra.mxu0 0
        %712 = vmatprep.subr.bf16.mxu0 0
        %713 = vmatpush2.bf16.msra.mxu0 0
        %714 = vmatprep.subr.bf16.mxu0 0
        %715 = vmatpush2.bf16.msra.mxu0 0
        %716 = vmatprep.mubr.bf16.mxu0 0
        %717 = vmatmul.mubr.bf16.gmra.mxu0 %v676
        %v718 = vpop.f32.mrf.mxu0
        %v719 = vadd.f32 0.0, %v718
        %v720 = vpop.f32.mrf.mxu0
        %v721 = vpop.f32.mrf.mxu0
        %v722 = vadd.f32 0.0, %v721
        %v723 = vpop.f32.mrf.mxu0
        %724 = vmatprep.mubr.bf16.mxu0 0
        %725 = vmatmul.mubr.bf16.gmra.mxu0 %v679
        %v726 = vpop.f32.mrf.mxu0
        %v727 = vadd.f32 0.0, %v726
        %v728 = vpop.f32.mrf.mxu0
        %v729 = vpop.f32.mrf.mxu0
        %v730 = vpop.f32.mrf.mxu0
        %731 = vdwg.mxu0
        %v732 = vadd.f32 %v654, %v719
        %v733 = vadd.f32 %v655, %v722
        %v734 = vadd.f32 %v656, %v727
        %v735 = vld [vmem:[%s588 + $0x8] sm:$0xf]
        %v736 = vrot.slane %v526, 3
        %v737 = vrot.slane %v592, 3
        %v738 = vsel %vm387, %v736, %v737
        %v740 = vsel %vm203, %v738, 0
        %v743 = vsel %vm203, %v737, 0
        %v746 = vsel %vm210, %v735, 0
        %748 = vmatprep.subr.bf16.mxu0 0
        %749 = vmatpush1.bf16.msra.mxu0 0
        %750 = vmatprep.subr.bf16.mxu0 0
        %751 = vmatpush1.bf16.msra.mxu0 0
        %752 = vmatprep.subr.bf16.mxu0 0
        %753 = vmatpush1.bf16.msra.mxu0 0
        %754 = vmatprep.subr.bf16.mxu0 0
        %755 = vmatpush1.bf16.msra.mxu0 0
        %756 = vmatprep.subr.bf16.mxu0 0
        %757 = vmatpush1.bf16.msra.mxu0 0
        %758 = vmatprep.subr.bf16.mxu0 0
        %759 = vmatpush1.bf16.msra.mxu0 0
        %760 = vmatprep.subr.bf16.mxu0 0
        %761 = vmatpush1.bf16.msra.mxu0 0
        %762 = vmatprep.subr.bf16.mxu0 0
        %763 = vmatpush1.bf16.msra.mxu0 %v746
        %764 = vmatprep.subr.bf16.mxu0 0
        %765 = vmatpush2.bf16.msra.mxu0 0
        %766 = vmatprep.subr.bf16.mxu0 0
        %767 = vmatpush2.bf16.msra.mxu0 0
        %768 = vmatprep.subr.bf16.mxu0 0
        %769 = vmatpush2.bf16.msra.mxu0 0
        %770 = vmatprep.subr.bf16.mxu0 0
        %771 = vmatpush2.bf16.msra.mxu0 0
        %772 = vmatprep.subr.bf16.mxu0 0
        %773 = vmatpush2.bf16.msra.mxu0 0
        %774 = vmatprep.subr.bf16.mxu0 0
        %775 = vmatpush2.bf16.msra.mxu0 0
        %776 = vmatprep.subr.bf16.mxu0 0
        %777 = vmatpush2.bf16.msra.mxu0 0
        %778 = vmatprep.subr.bf16.mxu0 0
        %779 = vmatpush2.bf16.msra.mxu0 0
        %780 = vmatprep.mubr.bf16.mxu0 0
        %781 = vmatmul.mubr.bf16.gmra.mxu0 %v740
        %v782 = vpop.f32.mrf.mxu0
        %v783 = vadd.f32 0.0, %v782
        %v784 = vpop.f32.mrf.mxu0
        %v785 = vpop.f32.mrf.mxu0
        %v786 = vadd.f32 0.0, %v785
        %v787 = vpop.f32.mrf.mxu0
        %788 = vmatprep.mubr.bf16.mxu0 0
        %789 = vmatmul.mubr.bf16.gmra.mxu0 %v743
        %v790 = vpop.f32.mrf.mxu0
        %v791 = vadd.f32 0.0, %v790
        %v792 = vpop.f32.mrf.mxu0
        %v793 = vpop.f32.mrf.mxu0
        %v794 = vpop.f32.mrf.mxu0
        %795 = vdwg.mxu0
        %v796 = vadd.f32 %v732, %v783
        %v797 = vadd.f32 %v733, %v786
        %v798 = vadd.f32 %v734, %v791
        %v799 = vld [vmem:[%s2] sm:$0x1]
        %v801 = vlaneseq
        %v802 = vshrl.u32 %v801, 7
        %v803 = vsub.s32 0, %v802
        %v804 = vrot.slane %v799, %v803
        %v806 = vadd.f32 %v796, %v804
        %v807 = vadd.f32 %v797, %v804
        %v808 = vadd.f32 %v798, %v804
        %v809 = vmax.f32 %v806, 0.0
        %v810 = vmax.f32 %v807, 0.0
        %v811 = vmax.f32 %v808, 0.0
        %v812 = vpack.c.bf16 %v810, %v809
        %v813 = vpack.c.bf16 %v811, %v811
        %vm814 = vcmask 123904
        %815 = vst.msk [vmem:[%s164] sm:$0x3] %vm814, %v812
        %v817 = vunpack.c.l.b16 %v812
        %v818 = vunpack.c.h.b16 %v812
        %v819 = vpack.c.b16 %v817, %v817
        %v820 = vpack.c.b16 %v818, %v818
        %vm821 = vcmask 1042432
        %vm822 = vcmask 1046532
        %vm823 = vmor %vm821, %vm822
        %v824 = vrot.slane %v819, 5
        %v825 = vrot.slane %v824, 4
        %v826 = vrot.slane %v820, 5
        %v827 = vsel %vm823, %v825, %v826
        %vm829 = vcmask 125954
        %830 = vst.msk [vmem:[%s164] sm:$0xc] %vm829, %v827
        %v831 = vrot.slane %v820, 6
        %v832 = vrot.slane %v831, 4
        %834 = vst.msk [vmem:[%s164 + $0x4] sm:$0x3] %vm814, %v832
        %v836 = vunpack.c.l.b16 %v813
        %v837 = vpack.c.b16 %v836, %v836
        %v838 = vrot.slane %v837, 7
        %840 = vst.msk [vmem:[%s164 + $0x4] sm:$0xc] %vm829, %v838
        %s841 = sand.u32 %s93, 1
        %s842 = scalar_lea.sflag [#allocation3], %s841
        %s843 = sand.u32 %s93, 1
        %s844 = smul.addr %s843, 8
        %s845 = scalar_lea.vmem [#allocation2], %s844
        // Predicated region
        $region33: #{_conv_impl.1} parent=31 // pred_check
          %p846 = pneg %p103
        $region34: #{_conv_impl.1} parent=31 // pred_check_branch
          %848 = sbr.rel (%p846) target = $region36
        $region35: #{_conv_impl.1} parent=31 // pred_region
          %s850 = ssub.s32 128, 128
          %851 = vsyncadd %s842, %s850
          %s852 = smul.addr %s17, 2
          %s853 = smul.addr %s852, 64
          %s854 = scalar_lea.hbm %s3, %s853
          %s855 = sshll.u32 %s845, 4
          %s856 = int_to_ptr.vmem [resolvable:$true] %s855
          %861 = dma.vmem_to_hbm [thread:$0]  %s856, 128, %s854, %s842, 64, 64, 4
        $region36: #{_conv_impl.1} parent=31 // pred_fallthru
          _
      $region32: #{_conv_impl.1} parent=5 // pred_fallthru
        _
      %p862 = scmp.le.s32.totalorder 2, %s12
      // Predicated region
      $region37: #{_conv_impl.1} parent=5 // pred_check
        %p863 = pneg %p862
      $region38: #{_conv_impl.1} parent=5 // pred_check_branch
        %865 = sbr.rel (%p863) target = $region40
      $region39: #{_conv_impl.1} parent=5 // pred_region
        %s866 = ssub.s32 %s12, 2
        // Predicated region
        $region41: #{_conv_impl.1} parent=39 // pred_check
          %p867 = pneg %p109
        $region42: #{_conv_impl.1} parent=39 // pred_check_branch
          %869 = sbr.rel (%p867) target = $region44
        $region43: #{_conv_impl.1} parent=39 // pred_region
          %s870 = sand.u32 %s94, 1
          %s871 = scalar_lea.sflag [#allocation3], %s870
          %s872 = sand.u32 %s94, 1
          %s873 = smul.addr %s872, 8
          %s874 = scalar_lea.vmem [#allocation2], %s873
          %875 = dma.done %s871, 128
        $region44: #{_conv_impl.1} parent=39 // pred_fallthru
          _
      $region40: #{_conv_impl.1} parent=5 // pred_fallthru
        _
    $region6: #{_conv_impl.1} parent=1 // loop_footer
      %s16 = sadd.s32 1, %s12
    $region7: #{_conv_impl.1} parent=1 // loop_footer_branch
      %11 = sbr.rel target = $region3
    $region8: #{_conv_impl.1} parent=1 // loop_exit
      _
    %876 = vsyncpa [#allocation3], 1
    %s877 = scalar_lea.sflag [#allocation3], 1
    %878 = vsyncpa %s877, 1

</llo_original>
